<compile_context>
chip_gen: v6e
topology: v6e:2x2x1
jax: 0.10.0
libtpu: 0.0.40
codegen_flags: <defaults>
</compile_context>

<pallas_src>
import math

import jax
import jax.numpy as jnp
from jax.experimental import pallas as pl
from jax.experimental.pallas import tpu as pltpu


def _cdiv(a, b):
    return -(-a // b)


def _vmem_capacity_bytes():
    """Physical VMEM per TensorCore, with a device-kind-aware fallback."""
    try:
        cap = getattr(pltpu.get_tpu_info(), "vmem_capacity_bytes", None)
        if cap:
            return int(cap)
    except Exception:
        pass
    try:
        kind = jax.devices()[0].device_kind.lower()
    except Exception:
        kind = ""
    if "v7" in kind:
        return 64 * (1 << 20)           # v7x: 64 MiB per TensorCore
    if any(t in kind for t in ("v2", "v3", "v4", "v5", "v6")):
        return 128 * (1 << 20)          # v5e / v6e (and older): 128 MiB
    return 64 * (1 << 20)               # unknown part: stay conservative


def _topdown_lateral_kernel(lat_ref, w_ref, b_ref, td_ref, out_ref):
    """Fused 1x1 conv (block-diag matmul on pixel-pair rows) + bias + 2x NN upsample add.

    lat_ref: (BM2, 2*C_lat)     pixel-pair rows of the lateral feature map
    w_ref:   (2*C_lat, 2*C_top) block-diagonal 1x1 conv weight (constant block)
    b_ref:   (1, 2*C_top)       bias, duplicated over the pixel pair
    td_ref:  (P, W, C_top)      raw top scanlines; each feeds a *pair* of output
                                scanlines (fused H-duplication), or
             (BM2, C_top)       H-duplicated top rows (fallback when W % 8 != 0)
    out_ref: (BM2, 2*C_top)     pixel-pair rows of the output
    """
    conv = jnp.dot(lat_ref[...], w_ref[...], preferred_element_type=jnp.float32)
    td = td_ref[...]
    if td.ndim == 3:
        # H (scanline) duplication: broadcast every top scanline onto two
        # consecutive output scanlines.  Leading-dim broadcast + 8-aligned
        # sublane merge (W % 8 == 0): layout-free.
        p, w, c = td.shape
        td = jnp.broadcast_to(td[:, None, :, :], (p, 2, w, c)).reshape(p * 2 * w, c)
    # W (pixel) duplication: the output lanes hold two adjacent output pixels,
    # so duplicating along W is a lane-dim concat - no sublane interleave.
    td2 = jnp.concatenate([td, td], axis=-1)
    out_ref[...] = (conv + b_ref[...] + td2).astype(out_ref.dtype)


def topdown_lateral_forward_nhwc(top_nhwc, lateral_nhwc, weight, bias, *,
                                 block_pairs=None, compute_dtype=None):
    """Channels-last fast path.

    top_nhwc:     (N, H, W, C_top)
    lateral_nhwc: (N, 2H, 2W, C_lat)
    weight:       (C_top, C_lat) or (C_top, C_lat, 1, 1)   1x1 conv weight
    bias:         (C_top,)
    block_pairs:  optional override of scanline-pairs processed per grid step.
    compute_dtype: only pass a narrower dtype (e.g. bf16) when the inputs already
                   arrive in that dtype (or the cast fuses upstream); otherwise the
                   wrapper-side astype adds a full extra HBM read+write pass.
    Returns (N, 2H, 2W, C_top).
    """
    N, H, W, C_top = top_nhwc.shape
    Nl, Ho, Wo, C_lat = lateral_nhwc.shape
    assert Nl == N and Ho == 2 * H and Wo == 2 * W, "lateral must be 2x the top spatially"

    out_dtype = jnp.promote_types(top_nhwc.dtype, lateral_nhwc.dtype)
    n_pairs = N * H                       # one top scanline feeds a pair of output scanlines
    M_half = 2 * n_pairs * W              # pixel-pair rows of the output

    lat_dtype = jnp.dtype(lateral_nhwc.dtype)
    if compute_dtype is not None:
        lat_dtype = jnp.dtype(compute_dtype)

    # Free, row-major-compatible pixel-pair views.
    lat2 = lateral_nhwc.reshape(M_half, 2 * C_lat)
    if lat2.dtype != lat_dtype:
        lat2 = lat2.astype(lat_dtype)     # NOTE: extra HBM pass - see compute_dtype docstring.

    # Block-diagonal 1x1 conv weight: [[W^T, 0], [0, W^T]]  (tiny, built once per call).
    wt = weight.reshape(C_top, C_lat).T.astype(lat_dtype)          # (C_lat, C_top)
    w2 = jnp.zeros((2 * C_lat, 2 * C_top), lat_dtype)
    w2 = w2.at[:C_lat, :C_top].set(wt).at[C_lat:, C_top:].set(wt)
    b2 = jnp.concatenate([bias, bias]).reshape(1, 2 * C_top).astype(jnp.float32)

    lat_isz = jnp.dtype(lat_dtype).itemsize
    td_isz = jnp.dtype(top_nhwc.dtype).itemsize
    out_isz = jnp.dtype(out_dtype).itemsize

    fuse_h = (W % 8 == 0)
    if fuse_h:
        # Raw top scanlines; the kernel duplicates them over H (free merge) and W (lanes).
        td_arr = top_nhwc.reshape(n_pairs, W, C_top)
        td_rows_per_pair = W
    else:
        # Only the H duplication is materialized by XLA; W stays fused in-kernel.
        td_arr = jnp.broadcast_to(
            top_nhwc.reshape(N, H, 1, W, C_top), (N, H, 2, W, C_top)
        ).reshape(M_half, C_top)
        td_rows_per_pair = 2 * W

    # ---- VMEM-aware tile sizing (counts pipeline buffers AND in-kernel temps) ----
    vmem_cap = _vmem_capacity_bytes()
    vmem_limit = (vmem_cap * 3) // 4
    budget = (vmem_cap * 3) // 8
    # Constant weight/bias blocks are DMAed once but still double-buffered.
    # TODO(synk): pipeline_mode=pl.Buffered(1) on the weight/bias specs would drop their
    # second buffer; kept off until buffer_count=1 is verified on the target jax version.
    fixed = 2 * ((2 * C_lat) * (2 * C_top) * lat_isz + (2 * C_top) * 4) + (2 << 20)
    per_pair = (
        2 * (2 * W) * (2 * C_lat) * lat_isz        # lateral rows, double-buffered
        + 2 * (2 * W) * (2 * C_top) * out_isz      # output rows, double-buffered
        + 2 * td_rows_per_pair * C_top * td_isz    # top-down rows, double-buffered
        + (2 * W) * C_top * 4 * 10                 # in-kernel f32 temps (conv, td dup, cast)
    )
    q = 4 // math.gcd(W, 4)                        # granularity keeping 2*p*W % 8 == 0
    if block_pairs is not None:
        p = max(1, int(block_pairs))
    else:
        p = max(1, (budget - fixed) // per_pair)
    p = int(min(p, n_pairs))
    if p < n_pairs:
        p = max(q, (p // q) * q)
        if p >= n_pairs:
            p = n_pairs
    if block_pairs is None and p < n_pairs:
        # A few grid steps give DMA/compute overlap (and feed both v7x TensorCores),
        # but never shrink tiles below ~512 output pixel-pair rows (HBM sweet spot).
        while p > q and _cdiv(n_pairs, p) < 4 and (p // 2) * 2 * W >= 512:
            p = max(q, ((p // 2) // q) * q)
    bm2 = 2 * p * W
    grid = (_cdiv(n_pairs, p),)

    if fuse_h:
        td_spec = pl.BlockSpec((p, W, C_top), lambda i: (i, 0, 0))
    else:
        td_spec = pl.BlockSpec((bm2, C_top), lambda i: (i, 0))

    cost = pl.CostEstimate(
        flops=2 * M_half * (2 * C_lat) * (2 * C_top),
        transcendentals=0,
        bytes_accessed=int(
            M_half * 2 * C_lat * lat_isz
            + td_arr.size * td_isz
            + M_half * 2 * C_top * out_isz
            + w2.size * lat_isz + b2.size * 4
        ),
    )

    out2 = pl.pallas_call(
        _topdown_lateral_kernel,
        out_shape=jax.ShapeDtypeStruct((M_half, 2 * C_top), out_dtype),
        grid_spec=pltpu.PrefetchScalarGridSpec(
            num_scalar_prefetch=0,
            grid=grid,
            in_specs=[
                pl.BlockSpec((bm2, 2 * C_lat), lambda i: (i, 0)),        # lateral pixel pairs
                pl.BlockSpec((2 * C_lat, 2 * C_top), lambda i: (0, 0)),  # block-diag weight
                pl.BlockSpec((1, 2 * C_top), lambda i: (0, 0)),          # bias
                td_spec,                                                 # top-down scanlines
            ],
            out_specs=pl.BlockSpec((bm2, 2 * C_top), lambda i: (i, 0)),
        ),
        compiler_params=pltpu.CompilerParams(
            dimension_semantics=("parallel",),
            vmem_limit_bytes=int(vmem_limit),
        ),
        cost_estimate=cost,
    )(lat2, w2, b2, td_arr)

    return out2.reshape(N, Ho, Wo, C_top)


def topdown_lateral_forward(top_blob, lateral_blob, weight, bias, **kwargs):
    """NCHW wrapper matching the PyTorch module's layout.

    Prefer topdown_lateral_forward_nhwc in channels-last pipelines: each transpose
    here is a full read+write HBM pass on the large lateral / output tensors."""
    top_nhwc = jnp.transpose(top_blob, (0, 2, 3, 1))
    lat_nhwc = jnp.transpose(lateral_blob, (0, 2, 3, 1))
    out_nhwc = topdown_lateral_forward_nhwc(top_nhwc, lat_nhwc, weight, bias, **kwargs)
    return jnp.transpose(out_nhwc, (0, 3, 1, 2))


def init_params(key, dim_in_top, dim_in_lateral):
    """XavierFill (uniform) for the 1x1 conv weight, zero bias (default cfg path)."""
    fan_in = dim_in_lateral   # 1x1 kernel
    fan_out = dim_in_top
    bound = (6.0 / (fan_in + fan_out)) ** 0.5
    weight = jax.random.uniform(
        key, (dim_in_top, dim_in_lateral), jnp.float32, minval=-bound, maxval=bound
    )
    bias = jnp.zeros((dim_in_top,), jnp.float32)
    return weight, bias


if __name__ == "__main__":
    key = jax.random.PRNGKey(0)
    k_w, k_b, k_top, k_lat, k_top2, k_lat2, k_top3, k_lat3 = jax.random.split(key, 8)

    dim_in_top, dim_in_lateral = 8, 4
    weight, _zero_bias = init_params(k_w, dim_in_top, dim_in_lateral)
    bias = 0.1 * jax.random.normal(k_b, (dim_in_top,), jnp.float32)  # nonzero to exercise bias path

    def ref_nhwc(top, lat, w, b):
        w2d = w.reshape(w.shape[0], -1)
        conv = jnp.einsum("nhwc,oc->nhwo", lat, w2d) + b[None, None, None, :]
        td = jnp.repeat(jnp.repeat(top, 2, axis=1), 2, axis=2)
        return conv + td

    # --- Test 1: NCHW wrapper (module layout), fully fused path (W % 8 == 0) ---
    N, H, W = 2, 16, 16
    top_blob = jax.random.normal(k_top, (N, dim_in_top, H, W), jnp.float32)
    lateral_blob = jax.random.normal(k_lat, (N, dim_in_lateral, 2 * H, 2 * W), jnp.float32)
    out = jax.block_until_ready(
        jax.jit(topdown_lateral_forward)(top_blob, lateral_blob, weight, bias))
    ref = jnp.transpose(
        ref_nhwc(jnp.transpose(top_blob, (0, 2, 3, 1)),
                 jnp.transpose(lateral_blob, (0, 2, 3, 1)), weight, bias),
        (0, 3, 1, 2))
    assert out.shape == (N, dim_in_top, 2 * H, 2 * W)
    assert jnp.allclose(out, ref, atol=1e-5, rtol=1e-5), float(jnp.max(jnp.abs(out - ref)))

    # --- Test 2: NHWC path, fused H-duplication with a ragged last block -------
    N2, H2, W2 = 1, 5, 8
    top2 = jax.random.normal(k_top2, (N2, H2, W2, dim_in_top), jnp.float32)
    lat2 = jax.random.normal(k_lat2, (N2, 2 * H2, 2 * W2, dim_in_lateral), jnp.float32)
    out2 = jax.block_until_ready(
        jax.jit(lambda t, l: topdown_lateral_forward_nhwc(t, l, weight, bias,
                                                          block_pairs=2))(top2, lat2))
    assert jnp.allclose(out2, ref_nhwc(top2, lat2, weight, bias), atol=1e-5, rtol=1e-5)

    # --- Test 3: NHWC path, W % 8 != 0 fallback (wrapper H-dup) + ragged block --
    N3, H3, W3 = 1, 6, 10
    top3 = jax.random.normal(k_top3, (N3, H3, W3, dim_in_top), jnp.float32)
    lat3 = jax.random.normal(k_lat3, (N3, 2 * H3, 2 * W3, dim_in_lateral), jnp.float32)
    out3 = jax.block_until_ready(
        jax.jit(lambda t, l: topdown_lateral_forward_nhwc(t, l, weight, bias,
                                                          block_pairs=4))(top3, lat3))
    assert jnp.allclose(out3, ref_nhwc(top3, lat3, weight, bias), atol=1e-5, rtol=1e-5)

    print("KERNEL_OK")
</pallas_src>

<mosaic_0001>
module attributes {stable_mosaic.version = 11 : i64} {
  func.func @_topdown_lateral_kernel(%arg0: i32, %arg1: memref<1024x8xf32, #tpu.memory_space<vmem>>, %arg2: memref<8x16xf32, #tpu.memory_space<vmem>>, %arg3: memref<1x16xf32, #tpu.memory_space<vmem>>, %arg4: memref<32x16x8xf32, #tpu.memory_space<vmem>>, %arg5: memref<1024x16xf32, #tpu.memory_space<vmem>>) attributes {dimension_semantics = [#tpu.dimension_semantics<parallel>], iteration_bounds = array<i64: 1>, scalar_prefetch = 0 : i64, scratch_operands = 0 : i64, tpu.core_type = #tpu.core_type<tc>, window_params = [{transform_indices = @transform_0, window_bounds = array<i64: 1024, 8>}, {pipeline_mode = #tpu.pipeline_mode<synchronous>, transform_indices = @transform_1, window_bounds = array<i64: 8, 16>}, {pipeline_mode = #tpu.pipeline_mode<synchronous>, transform_indices = @transform_2, window_bounds = array<i64: 1, 16>}, {transform_indices = @transform_3, window_bounds = array<i64: 32, 16, 8>}, {transform_indices = @transform_4, window_bounds = array<i64: 1024, 16>}]} {
    %c0 = arith.constant 0 : index
    %c0_0 = arith.constant 0 : index
    %0 = vector.load %arg1[%c0, %c0_0] : memref<1024x8xf32, #tpu.memory_space<vmem>>, vector<1024x8xf32>
    %c0_1 = arith.constant 0 : index
    %c0_2 = arith.constant 0 : index
    %1 = vector.load %arg2[%c0_1, %c0_2] : memref<8x16xf32, #tpu.memory_space<vmem>>, vector<8x16xf32>
    %cst = arith.constant dense<0.000000e+00> : vector<1024x16xf32>
    %2 = tpu.matmul %0, %1, %cst {dimension_numbers = #tpu.dot_dimension_numbers<[1], [0], [0], [1], [0, 0, 1, 1], [], []>} : vector<1024x8xf32>, vector<8x16xf32>, vector<1024x16xf32> -> vector<1024x16xf32>
    %c0_3 = arith.constant 0 : index
    %c0_4 = arith.constant 0 : index
    %c0_5 = arith.constant 0 : index
    %3 = vector.load %arg4[%c0_3, %c0_4, %c0_5] : memref<32x16x8xf32, #tpu.memory_space<vmem>>, vector<32x16x8xf32>
    %4 = vector.shape_cast %3 : vector<32x16x8xf32> to vector<32x1x16x8xf32>
    %5 = vector.shape_cast %4 : vector<32x1x16x8xf32> to vector<32x1x16x8xf32>
    %6 = vector.broadcast %5 : vector<32x1x16x8xf32> to vector<32x2x16x8xf32>
    %7 = vector.shape_cast %6 : vector<32x2x16x8xf32> to vector<1024x8xf32>
    %8 = tpu.concatenate %7, %7 in 1 : vector<1024x8xf32>, vector<1024x8xf32> -> vector<1024x16xf32>
    %c0_6 = arith.constant 0 : index
    %c0_7 = arith.constant 0 : index
    %9 = vector.load %arg3[%c0_6, %c0_7] : memref<1x16xf32, #tpu.memory_space<vmem>>, vector<1x16xf32>
    %10 = vector.broadcast %9 : vector<1x16xf32> to vector<1024x16xf32>
    %11 = arith.addf %2, %10 : vector<1024x16xf32>
    %12 = arith.addf %11, %8 : vector<1024x16xf32>
    %c0_8 = arith.constant 0 : index
    %c0_9 = arith.constant 0 : index
    %13 = vector.load %arg5[%c0_8, %c0_9] : memref<1024x16xf32, #tpu.memory_space<vmem>>, vector<1024x16xf32>
    tpu.vector_store %arg5[%c0_8, %c0_9], %12 {strides = array<i32>} : memref<1024x16xf32, #tpu.memory_space<vmem>>, vector<1024x16xf32>,
    return
  }
  func.func @transform_0(%arg0: i32) -> (i32, i32) {
    %c0_i32 = arith.constant 0 : i32
    %c0_i32_0 = arith.constant 0 : i32
    return %arg0, %c0_i32 : i32, i32
  }
  func.func @transform_1(%arg0: i32) -> (i32, i32) {
    %c0_i32 = arith.constant 0 : i32
    %c0_i32_0 = arith.constant 0 : i32
    %c0_i32_1 = arith.constant 0 : i32
    return %c0_i32, %c0_i32_0 : i32, i32
  }
  func.func @transform_2(%arg0: i32) -> (i32, i32) {
    %c0_i32 = arith.constant 0 : i32
    %c0_i32_0 = arith.constant 0 : i32
    %c0_i32_1 = arith.constant 0 : i32
    return %c0_i32, %c0_i32_0 : i32, i32
  }
  func.func @transform_3(%arg0: i32) -> (i32, i32, i32) {
    %c0_i32 = arith.constant 0 : i32
    %c0_i32_0 = arith.constant 0 : i32
    %c0_i32_1 = arith.constant 0 : i32
    return %arg0, %c0_i32, %c0_i32_0 : i32, i32, i32
  }
  func.func @transform_4(%arg0: i32) -> (i32, i32) {
    %c0_i32 = arith.constant 0 : i32
    %c0_i32_0 = arith.constant 0 : i32
    return %arg0, %c0_i32 : i32, i32
  }
}

</mosaic_0001>

<llo_original>
// kernel: topdown_lateral_forward.1
$region0: #{topdown_lateral_forward.1}
  #allocation0 [shape = 'u32[]', space=smem, size = 0x4, offset = 0x4, fixed_abs, tag = 'smem constant byte address 0x4 - core index']
  #allocation1 [shape = 'u32[144,128]{1,0:T(1,128)}', space=vmem, size = 0x12000, scoped, tag = 'internal scratch']
  %s0 = inlined_call_operand.vmem [shape: f32[1024,8], index: 0, kind: input, shape index: {}]
  %s1 = inlined_call_operand.vmem [shape: f32[8,16], index: 1, kind: input, shape index: {}]
  %s2 = inlined_call_operand.vmem [shape: f32[1,16], index: 2, kind: input, shape index: {}]
  %s3 = inlined_call_operand.vmem [shape: f32[32,16,8], index: 3, kind: input, shape index: {}]
  %s4 = inlined_call_operand.vmem [shape: f32[1024,16], index: 4, kind: output, shape index: {}]
  %s5 = sld [smem:[#allocation0]]
  $region26: #{topdown_lateral_forward.1} parent=0
    _
  %s7 = ssub.s32 1, %s5
  %s8 = scalar_select 0, %s7, %s5
  // Predicated region
  $region2: #{topdown_lateral_forward.1} parent=0 // pred_check
    _
  $region3: #{topdown_lateral_forward.1} parent=0 // pred_check_branch
    %10 = sbr.rel (0) target = $region5
  $region4: #{topdown_lateral_forward.1} parent=0 // pred_region
    _
  $region5: #{topdown_lateral_forward.1} parent=0 // pred_fallthru
    _
  // Predicated region
  $region6: #{topdown_lateral_forward.1} parent=0 // pred_check
    _
  $region7: #{topdown_lateral_forward.1} parent=0 // pred_check_branch
    %12 = sbr.rel (0) target = $region9
  $region8: #{topdown_lateral_forward.1} parent=0 // pred_region
    _
  $region9: #{topdown_lateral_forward.1} parent=0 // pred_fallthru
    _
  // Predicated region
  $region10: #{topdown_lateral_forward.1} parent=0 // pred_check
    _
  $region11: #{topdown_lateral_forward.1} parent=0 // pred_check_branch
    %14 = sbr.rel (0) target = $region13
  $region12: #{topdown_lateral_forward.1} parent=0 // pred_region
    _
  $region13: #{topdown_lateral_forward.1} parent=0 // pred_fallthru
    _
  // Predicated region
  $region14: #{topdown_lateral_forward.1} parent=0 // pred_check
    _
  $region15: #{topdown_lateral_forward.1} parent=0 // pred_check_branch
    %16 = sbr.rel (0) target = $region17
  $region16: #{topdown_lateral_forward.1} parent=0 // pred_region
    _
  $region17: #{topdown_lateral_forward.1} parent=0 // pred_fallthru
    _
  %v17 = vld [vmem:[%s0] sm:$0xff]
  %v18 = vld [vmem:[%s0 + $0x8] sm:$0xff]
  %v19 = vld [vmem:[%s0 + $0x10] sm:$0xff]
  %v20 = vld [vmem:[%s0 + $0x18] sm:$0xff]
  %v21 = vld [vmem:[%s0 + $0x20] sm:$0xff]
  %v22 = vld [vmem:[%s0 + $0x28] sm:$0xff]
  %v23 = vld [vmem:[%s0 + $0x30] sm:$0xff]
  %v24 = vld [vmem:[%s0 + $0x38] sm:$0xff]
  %v25 = vld [vmem:[%s0 + $0x40] sm:$0xff]
  %v26 = vld [vmem:[%s0 + $0x48] sm:$0xff]
  %v27 = vld [vmem:[%s0 + $0x50] sm:$0xff]
  %v28 = vld [vmem:[%s0 + $0x58] sm:$0xff]
  %v29 = vld [vmem:[%s0 + $0x60] sm:$0xff]
  %v30 = vld [vmem:[%s0 + $0x68] sm:$0xff]
  %v31 = vld [vmem:[%s0 + $0x70] sm:$0xff]
  %v32 = vld [vmem:[%s0 + $0x78] sm:$0xff]
  %v33 = vld [vmem:[%s0 + $0x80] sm:$0xff]
  %v34 = vld [vmem:[%s0 + $0x88] sm:$0xff]
  %v35 = vld [vmem:[%s0 + $0x90] sm:$0xff]
  %v36 = vld [vmem:[%s0 + $0x98] sm:$0xff]
  %v37 = vld [vmem:[%s0 + $0xa0] sm:$0xff]
  %v38 = vld [vmem:[%s0 + $0xa8] sm:$0xff]
  %v39 = vld [vmem:[%s0 + $0xb0] sm:$0xff]
  %v40 = vld [vmem:[%s0 + $0xb8] sm:$0xff]
  %v41 = vld [vmem:[%s0 + $0xc0] sm:$0xff]
  %v42 = vld [vmem:[%s0 + $0xc8] sm:$0xff]
  %v43 = vld [vmem:[%s0 + $0xd0] sm:$0xff]
  %v44 = vld [vmem:[%s0 + $0xd8] sm:$0xff]
  %v45 = vld [vmem:[%s0 + $0xe0] sm:$0xff]
  %v46 = vld [vmem:[%s0 + $0xe8] sm:$0xff]
  %v47 = vld [vmem:[%s0 + $0xf0] sm:$0xff]
  %v48 = vld [vmem:[%s0 + $0xf8] sm:$0xff]
  %v49 = vld [vmem:[%s0 + $0x100] sm:$0xff]
  %v50 = vld [vmem:[%s0 + $0x108] sm:$0xff]
  %v51 = vld [vmem:[%s0 + $0x110] sm:$0xff]
  %v52 = vld [vmem:[%s0 + $0x118] sm:$0xff]
  %v53 = vld [vmem:[%s0 + $0x120] sm:$0xff]
  %v54 = vld [vmem:[%s0 + $0x128] sm:$0xff]
  %v55 = vld [vmem:[%s0 + $0x130] sm:$0xff]
  %v56 = vld [vmem:[%s0 + $0x138] sm:$0xff]
  %v57 = vld [vmem:[%s0 + $0x140] sm:$0xff]
  %v58 = vld [vmem:[%s0 + $0x148] sm:$0xff]
  %v59 = vld [vmem:[%s0 + $0x150] sm:$0xff]
  %v60 = vld [vmem:[%s0 + $0x158] sm:$0xff]
  %v61 = vld [vmem:[%s0 + $0x160] sm:$0xff]
  %v62 = vld [vmem:[%s0 + $0x168] sm:$0xff]
  %v63 = vld [vmem:[%s0 + $0x170] sm:$0xff]
  %v64 = vld [vmem:[%s0 + $0x178] sm:$0xff]
  %v65 = vld [vmem:[%s0 + $0x180] sm:$0xff]
  %v66 = vld [vmem:[%s0 + $0x188] sm:$0xff]
  %v67 = vld [vmem:[%s0 + $0x190] sm:$0xff]
  %v68 = vld [vmem:[%s0 + $0x198] sm:$0xff]
  %v69 = vld [vmem:[%s0 + $0x1a0] sm:$0xff]
  %v70 = vld [vmem:[%s0 + $0x1a8] sm:$0xff]
  %v71 = vld [vmem:[%s0 + $0x1b0] sm:$0xff]
  %v72 = vld [vmem:[%s0 + $0x1b8] sm:$0xff]
  %v73 = vld [vmem:[%s0 + $0x1c0] sm:$0xff]
  %v74 = vld [vmem:[%s0 + $0x1c8] sm:$0xff]
  %v75 = vld [vmem:[%s0 + $0x1d0] sm:$0xff]
  %v76 = vld [vmem:[%s0 + $0x1d8] sm:$0xff]
  %v77 = vld [vmem:[%s0 + $0x1e0] sm:$0xff]
  %v78 = vld [vmem:[%s0 + $0x1e8] sm:$0xff]
  %v79 = vld [vmem:[%s0 + $0x1f0] sm:$0xff]
  %v80 = vld [vmem:[%s0 + $0x1f8] sm:$0xff]
  %v81 = vld [vmem:[%s0 + $0x200] sm:$0xff]
  %v82 = vld [vmem:[%s0 + $0x208] sm:$0xff]
  %v83 = vld [vmem:[%s0 + $0x210] sm:$0xff]
  %v84 = vld [vmem:[%s0 + $0x218] sm:$0xff]
  %v85 = vld [vmem:[%s0 + $0x220] sm:$0xff]
  %v86 = vld [vmem:[%s0 + $0x228] sm:$0xff]
  %v87 = vld [vmem:[%s0 + $0x230] sm:$0xff]
  %v88 = vld [vmem:[%s0 + $0x238] sm:$0xff]
  %v89 = vld [vmem:[%s0 + $0x240] sm:$0xff]
  %v90 = vld [vmem:[%s0 + $0x248] sm:$0xff]
  %v91 = vld [vmem:[%s0 + $0x250] sm:$0xff]
  %v92 = vld [vmem:[%s0 + $0x258] sm:$0xff]
  %v93 = vld [vmem:[%s0 + $0x260] sm:$0xff]
  %v94 = vld [vmem:[%s0 + $0x268] sm:$0xff]
  %v95 = vld [vmem:[%s0 + $0x270] sm:$0xff]
  %v96 = vld [vmem:[%s0 + $0x278] sm:$0xff]
  %v97 = vld [vmem:[%s0 + $0x280] sm:$0xff]
  %v98 = vld [vmem:[%s0 + $0x288] sm:$0xff]
  %v99 = vld [vmem:[%s0 + $0x290] sm:$0xff]
  %v100 = vld [vmem:[%s0 + $0x298] sm:$0xff]
  %v101 = vld [vmem:[%s0 + $0x2a0] sm:$0xff]
  %v102 = vld [vmem:[%s0 + $0x2a8] sm:$0xff]
  %v103 = vld [vmem:[%s0 + $0x2b0] sm:$0xff]
  %v104 = vld [vmem:[%s0 + $0x2b8] sm:$0xff]
  %v105 = vld [vmem:[%s0 + $0x2c0] sm:$0xff]
  %v106 = vld [vmem:[%s0 + $0x2c8] sm:$0xff]
  %v107 = vld [vmem:[%s0 + $0x2d0] sm:$0xff]
  %v108 = vld [vmem:[%s0 + $0x2d8] sm:$0xff]
  %v109 = vld [vmem:[%s0 + $0x2e0] sm:$0xff]
  %v110 = vld [vmem:[%s0 + $0x2e8] sm:$0xff]
  %v111 = vld [vmem:[%s0 + $0x2f0] sm:$0xff]
  %v112 = vld [vmem:[%s0 + $0x2f8] sm:$0xff]
  %v113 = vld [vmem:[%s0 + $0x300] sm:$0xff]
  %v114 = vld [vmem:[%s0 + $0x308] sm:$0xff]
  %v115 = vld [vmem:[%s0 + $0x310] sm:$0xff]
  %v116 = vld [vmem:[%s0 + $0x318] sm:$0xff]
  %v117 = vld [vmem:[%s0 + $0x320] sm:$0xff]
  %v118 = vld [vmem:[%s0 + $0x328] sm:$0xff]
  %v119 = vld [vmem:[%s0 + $0x330] sm:$0xff]
  %v120 = vld [vmem:[%s0 + $0x338] sm:$0xff]
  %v121 = vld [vmem:[%s0 + $0x340] sm:$0xff]
  %v122 = vld [vmem:[%s0 + $0x348] sm:$0xff]
  %v123 = vld [vmem:[%s0 + $0x350] sm:$0xff]
  %v124 = vld [vmem:[%s0 + $0x358] sm:$0xff]
  %v125 = vld [vmem:[%s0 + $0x360] sm:$0xff]
  %v126 = vld [vmem:[%s0 + $0x368] sm:$0xff]
  %v127 = vld [vmem:[%s0 + $0x370] sm:$0xff]
  %v128 = vld [vmem:[%s0 + $0x378] sm:$0xff]
  %v129 = vld [vmem:[%s0 + $0x380] sm:$0xff]
  %v130 = vld [vmem:[%s0 + $0x388] sm:$0xff]
  %v131 = vld [vmem:[%s0 + $0x390] sm:$0xff]
  %v132 = vld [vmem:[%s0 + $0x398] sm:$0xff]
  %v133 = vld [vmem:[%s0 + $0x3a0] sm:$0xff]
  %v134 = vld [vmem:[%s0 + $0x3a8] sm:$0xff]
  %v135 = vld [vmem:[%s0 + $0x3b0] sm:$0xff]
  %v136 = vld [vmem:[%s0 + $0x3b8] sm:$0xff]
  %v137 = vld [vmem:[%s0 + $0x3c0] sm:$0xff]
  %v138 = vld [vmem:[%s0 + $0x3c8] sm:$0xff]
  %v139 = vld [vmem:[%s0 + $0x3d0] sm:$0xff]
  %v140 = vld [vmem:[%s0 + $0x3d8] sm:$0xff]
  %v141 = vld [vmem:[%s0 + $0x3e0] sm:$0xff]
  %v142 = vld [vmem:[%s0 + $0x3e8] sm:$0xff]
  %v143 = vld [vmem:[%s0 + $0x3f0] sm:$0xff]
  %v144 = vld [vmem:[%s0 + $0x3f8] sm:$0xff]
  %v145 = vld [vmem:[%s1] sm:$0xff]
  %v146 = vld [vmem:[%s3] sm:$0xff]
  %v147 = vld [vmem:[%s3 + $0x8] sm:$0xff]
  %v148 = vld [vmem:[%s3 + $0x10] sm:$0xff]
  %v149 = vld [vmem:[%s3 + $0x18] sm:$0xff]
  %v150 = vld [vmem:[%s3 + $0x20] sm:$0xff]
  %v151 = vld [vmem:[%s3 + $0x28] sm:$0xff]
  %v152 = vld [vmem:[%s3 + $0x30] sm:$0xff]
  %v153 = vld [vmem:[%s3 + $0x38] sm:$0xff]
  %v154 = vld [vmem:[%s3 + $0x40] sm:$0xff]
  %v155 = vld [vmem:[%s3 + $0x48] sm:$0xff]
  %v156 = vld [vmem:[%s3 + $0x50] sm:$0xff]
  %v157 = vld [vmem:[%s3 + $0x58] sm:$0xff]
  %v158 = vld [vmem:[%s3 + $0x60] sm:$0xff]
  %v159 = vld [vmem:[%s3 + $0x68] sm:$0xff]
  %v160 = vld [vmem:[%s3 + $0x70] sm:$0xff]
  %v161 = vld [vmem:[%s3 + $0x78] sm:$0xff]
  %v162 = vld [vmem:[%s3 + $0x80] sm:$0xff]
  %v163 = vld [vmem:[%s3 + $0x88] sm:$0xff]
  %v164 = vld [vmem:[%s3 + $0x90] sm:$0xff]
  %v165 = vld [vmem:[%s3 + $0x98] sm:$0xff]
  %v166 = vld [vmem:[%s3 + $0xa0] sm:$0xff]
  %v167 = vld [vmem:[%s3 + $0xa8] sm:$0xff]
  %v168 = vld [vmem:[%s3 + $0xb0] sm:$0xff]
  %v169 = vld [vmem:[%s3 + $0xb8] sm:$0xff]
  %v170 = vld [vmem:[%s3 + $0xc0] sm:$0xff]
  %v171 = vld [vmem:[%s3 + $0xc8] sm:$0xff]
  %v172 = vld [vmem:[%s3 + $0xd0] sm:$0xff]
  %v173 = vld [vmem:[%s3 + $0xd8] sm:$0xff]
  %v174 = vld [vmem:[%s3 + $0xe0] sm:$0xff]
  %v175 = vld [vmem:[%s3 + $0xe8] sm:$0xff]
  %v176 = vld [vmem:[%s3 + $0xf0] sm:$0xff]
  %v177 = vld [vmem:[%s3 + $0xf8] sm:$0xff]
  %v178 = vld [vmem:[%s3 + $0x100] sm:$0xff]
  %v179 = vld [vmem:[%s3 + $0x108] sm:$0xff]
  %v180 = vld [vmem:[%s3 + $0x110] sm:$0xff]
  %v181 = vld [vmem:[%s3 + $0x118] sm:$0xff]
  %v182 = vld [vmem:[%s3 + $0x120] sm:$0xff]
  %v183 = vld [vmem:[%s3 + $0x128] sm:$0xff]
  %v184 = vld [vmem:[%s3 + $0x130] sm:$0xff]
  %v185 = vld [vmem:[%s3 + $0x138] sm:$0xff]
  %v186 = vld [vmem:[%s3 + $0x140] sm:$0xff]
  %v187 = vld [vmem:[%s3 + $0x148] sm:$0xff]
  %v188 = vld [vmem:[%s3 + $0x150] sm:$0xff]
  %v189 = vld [vmem:[%s3 + $0x158] sm:$0xff]
  %v190 = vld [vmem:[%s3 + $0x160] sm:$0xff]
  %v191 = vld [vmem:[%s3 + $0x168] sm:$0xff]
  %v192 = vld [vmem:[%s3 + $0x170] sm:$0xff]
  %v193 = vld [vmem:[%s3 + $0x178] sm:$0xff]
  %v194 = vld [vmem:[%s3 + $0x180] sm:$0xff]
  %v195 = vld [vmem:[%s3 + $0x188] sm:$0xff]
  %v196 = vld [vmem:[%s3 + $0x190] sm:$0xff]
  %v197 = vld [vmem:[%s3 + $0x198] sm:$0xff]
  %v198 = vld [vmem:[%s3 + $0x1a0] sm:$0xff]
  %v199 = vld [vmem:[%s3 + $0x1a8] sm:$0xff]
  %v200 = vld [vmem:[%s3 + $0x1b0] sm:$0xff]
  %v201 = vld [vmem:[%s3 + $0x1b8] sm:$0xff]
  %v202 = vld [vmem:[%s3 + $0x1c0] sm:$0xff]
  %v203 = vld [vmem:[%s3 + $0x1c8] sm:$0xff]
  %v204 = vld [vmem:[%s3 + $0x1d0] sm:$0xff]
  %v205 = vld [vmem:[%s3 + $0x1d8] sm:$0xff]
  %v206 = vld [vmem:[%s3 + $0x1e0] sm:$0xff]
  %v207 = vld [vmem:[%s3 + $0x1e8] sm:$0xff]
  %v208 = vld [vmem:[%s3 + $0x1f0] sm:$0xff]
  %v209 = vld [vmem:[%s3 + $0x1f8] sm:$0xff]
  %274 = vrot.lane.b32.xlu0 %v146, 8
  %v275 = vpop.permute.xlu0 %274
  %276 = vrot.lane.b32.xlu0 %v147, 8
  %v277 = vpop.permute.xlu0 %276
  %278 = vrot.lane.b32.xlu0 %v148, 8
  %v279 = vpop.permute.xlu0 %278
  %280 = vrot.lane.b32.xlu0 %v149, 8
  %v281 = vpop.permute.xlu0 %280
  %282 = vrot.lane.b32.xlu0 %v150, 8
  %v283 = vpop.permute.xlu0 %282
  %284 = vrot.lane.b32.xlu0 %v151, 8
  %v285 = vpop.permute.xlu0 %284
  %286 = vrot.lane.b32.xlu0 %v152, 8
  %v287 = vpop.permute.xlu0 %286
  %288 = vrot.lane.b32.xlu0 %v153, 8
  %v289 = vpop.permute.xlu0 %288
  %290 = vrot.lane.b32.xlu0 %v154, 8
  %v291 = vpop.permute.xlu0 %290
  %292 = vrot.lane.b32.xlu0 %v155, 8
  %v293 = vpop.permute.xlu0 %292
  %294 = vrot.lane.b32.xlu0 %v156, 8
  %v295 = vpop.permute.xlu0 %294
  %296 = vrot.lane.b32.xlu0 %v157, 8
  %v297 = vpop.permute.xlu0 %296
  %298 = vrot.lane.b32.xlu0 %v158, 8
  %v299 = vpop.permute.xlu0 %298
  %300 = vrot.lane.b32.xlu0 %v159, 8
  %v301 = vpop.permute.xlu0 %300
  %302 = vrot.lane.b32.xlu0 %v160, 8
  %v303 = vpop.permute.xlu0 %302
  %304 = vrot.lane.b32.xlu0 %v161, 8
  %v305 = vpop.permute.xlu0 %304
  %306 = vrot.lane.b32.xlu0 %v162, 8
  %v307 = vpop.permute.xlu0 %306
  %308 = vrot.lane.b32.xlu0 %v163, 8
  %v309 = vpop.permute.xlu0 %308
  %310 = vrot.lane.b32.xlu0 %v164, 8
  %v311 = vpop.permute.xlu0 %310
  %312 = vrot.lane.b32.xlu0 %v165, 8
  %v313 = vpop.permute.xlu0 %312
  %314 = vrot.lane.b32.xlu0 %v166, 8
  %v315 = vpop.permute.xlu0 %314
  %316 = vrot.lane.b32.xlu0 %v167, 8
  %v317 = vpop.permute.xlu0 %316
  %318 = vrot.lane.b32.xlu0 %v168, 8
  %v319 = vpop.permute.xlu0 %318
  %320 = vrot.lane.b32.xlu0 %v169, 8
  %v321 = vpop.permute.xlu0 %320
  %322 = vrot.lane.b32.xlu0 %v170, 8
  %v323 = vpop.permute.xlu0 %322
  %324 = vrot.lane.b32.xlu0 %v171, 8
  %v325 = vpop.permute.xlu0 %324
  %326 = vrot.lane.b32.xlu0 %v172, 8
  %v327 = vpop.permute.xlu0 %326
  %328 = vrot.lane.b32.xlu0 %v173, 8
  %v329 = vpop.permute.xlu0 %328
  %330 = vrot.lane.b32.xlu0 %v174, 8
  %v331 = vpop.permute.xlu0 %330
  %332 = vrot.lane.b32.xlu0 %v175, 8
  %v333 = vpop.permute.xlu0 %332
  %334 = vrot.lane.b32.xlu0 %v176, 8
  %v335 = vpop.permute.xlu0 %334
  %336 = vrot.lane.b32.xlu0 %v177, 8
  %v337 = vpop.permute.xlu0 %336
  %338 = vrot.lane.b32.xlu0 %v178, 8
  %v339 = vpop.permute.xlu0 %338
  %340 = vrot.lane.b32.xlu0 %v179, 8
  %v341 = vpop.permute.xlu0 %340
  %342 = vrot.lane.b32.xlu0 %v180, 8
  %v343 = vpop.permute.xlu0 %342
  %344 = vrot.lane.b32.xlu0 %v181, 8
  %v345 = vpop.permute.xlu0 %344
  %346 = vrot.lane.b32.xlu0 %v182, 8
  %v347 = vpop.permute.xlu0 %346
  %348 = vrot.lane.b32.xlu0 %v183, 8
  %v349 = vpop.permute.xlu0 %348
  %350 = vrot.lane.b32.xlu0 %v184, 8
  %v351 = vpop.permute.xlu0 %350
  %352 = vrot.lane.b32.xlu0 %v185, 8
  %v353 = vpop.permute.xlu0 %352
  %354 = vrot.lane.b32.xlu0 %v186, 8
  %v355 = vpop.permute.xlu0 %354
  %356 = vrot.lane.b32.xlu0 %v187, 8
  %v357 = vpop.permute.xlu0 %356
  %358 = vrot.lane.b32.xlu0 %v188, 8
  %v359 = vpop.permute.xlu0 %358
  %360 = vrot.lane.b32.xlu0 %v189, 8
  %v361 = vpop.permute.xlu0 %360
  %362 = vrot.lane.b32.xlu0 %v190, 8
  %v363 = vpop.permute.xlu0 %362
  %364 = vrot.lane.b32.xlu0 %v191, 8
  %v365 = vpop.permute.xlu0 %364
  %366 = vrot.lane.b32.xlu0 %v192, 8
  %v367 = vpop.permute.xlu0 %366
  %368 = vrot.lane.b32.xlu0 %v193, 8
  %v369 = vpop.permute.xlu0 %368
  %370 = vrot.lane.b32.xlu0 %v194, 8
  %v371 = vpop.permute.xlu0 %370
  %372 = vrot.lane.b32.xlu0 %v195, 8
  %v373 = vpop.permute.xlu0 %372
  %374 = vrot.lane.b32.xlu0 %v196, 8
  %v375 = vpop.permute.xlu0 %374
  %376 = vrot.lane.b32.xlu0 %v197, 8
  %v377 = vpop.permute.xlu0 %376
  %378 = vrot.lane.b32.xlu0 %v198, 8
  %v379 = vpop.permute.xlu0 %378
  %380 = vrot.lane.b32.xlu0 %v199, 8
  %v381 = vpop.permute.xlu0 %380
  %382 = vrot.lane.b32.xlu0 %v200, 8
  %v383 = vpop.permute.xlu0 %382
  %384 = vrot.lane.b32.xlu0 %v201, 8
  %v385 = vpop.permute.xlu0 %384
  %386 = vrot.lane.b32.xlu0 %v202, 8
  %v387 = vpop.permute.xlu0 %386
  %388 = vrot.lane.b32.xlu0 %v203, 8
  %v389 = vpop.permute.xlu0 %388
  %390 = vrot.lane.b32.xlu0 %v204, 8
  %v391 = vpop.permute.xlu0 %390
  %392 = vrot.lane.b32.xlu0 %v205, 8
  %v393 = vpop.permute.xlu0 %392
  %394 = vrot.lane.b32.xlu0 %v206, 8
  %v395 = vpop.permute.xlu0 %394
  %396 = vrot.lane.b32.xlu0 %v207, 8
  %v397 = vpop.permute.xlu0 %396
  %398 = vrot.lane.b32.xlu0 %v208, 8
  %v399 = vpop.permute.xlu0 %398
  %400 = vrot.lane.b32.xlu0 %v209, 8
  %v401 = vpop.permute.xlu0 %400
  %vm466 = vcmask 64512
  %v467 = vsel %vm466, %v146, %v275
  %v468 = vsel %vm466, %v147, %v277
  %v469 = vsel %vm466, %v148, %v279
  %v470 = vsel %vm466, %v149, %v281
  %v471 = vsel %vm466, %v150, %v283
  %v472 = vsel %vm466, %v151, %v285
  %v473 = vsel %vm466, %v152, %v287
  %v474 = vsel %vm466, %v153, %v289
  %v475 = vsel %vm466, %v154, %v291
  %v476 = vsel %vm466, %v155, %v293
  %v477 = vsel %vm466, %v156, %v295
  %v478 = vsel %vm466, %v157, %v297
  %v479 = vsel %vm466, %v158, %v299
  %v480 = vsel %vm466, %v159, %v301
  %v481 = vsel %vm466, %v160, %v303
  %v482 = vsel %vm466, %v161, %v305
  %v483 = vsel %vm466, %v162, %v307
  %v484 = vsel %vm466, %v163, %v309
  %v485 = vsel %vm466, %v164, %v311
  %v486 = vsel %vm466, %v165, %v313
  %v487 = vsel %vm466, %v166, %v315
  %v488 = vsel %vm466, %v167, %v317
  %v489 = vsel %vm466, %v168, %v319
  %v490 = vsel %vm466, %v169, %v321
  %v491 = vsel %vm466, %v170, %v323
  %v492 = vsel %vm466, %v171, %v325
  %v493 = vsel %vm466, %v172, %v327
  %v494 = vsel %vm466, %v173, %v329
  %v495 = vsel %vm466, %v174, %v331
  %v496 = vsel %vm466, %v175, %v333
  %v497 = vsel %vm466, %v176, %v335
  %v498 = vsel %vm466, %v177, %v337
  %v499 = vsel %vm466, %v178, %v339
  %v500 = vsel %vm466, %v179, %v341
  %v501 = vsel %vm466, %v180, %v343
  %v502 = vsel %vm466, %v181, %v345
  %v503 = vsel %vm466, %v182, %v347
  %v504 = vsel %vm466, %v183, %v349
  %v505 = vsel %vm466, %v184, %v351
  %v506 = vsel %vm466, %v185, %v353
  %v507 = vsel %vm466, %v186, %v355
  %v508 = vsel %vm466, %v187, %v357
  %v509 = vsel %vm466, %v188, %v359
  %v510 = vsel %vm466, %v189, %v361
  %v511 = vsel %vm466, %v190, %v363
  %v512 = vsel %vm466, %v191, %v365
  %v513 = vsel %vm466, %v192, %v367
  %v514 = vsel %vm466, %v193, %v369
  %v515 = vsel %vm466, %v194, %v371
  %v516 = vsel %vm466, %v195, %v373
  %v517 = vsel %vm466, %v196, %v375
  %v518 = vsel %vm466, %v197, %v377
  %v519 = vsel %vm466, %v198, %v379
  %v520 = vsel %vm466, %v199, %v381
  %v521 = vsel %vm466, %v200, %v383
  %v522 = vsel %vm466, %v201, %v385
  %v523 = vsel %vm466, %v202, %v387
  %v524 = vsel %vm466, %v203, %v389
  %v525 = vsel %vm466, %v204, %v391
  %v526 = vsel %vm466, %v205, %v393
  %v527 = vsel %vm466, %v206, %v395
  %v528 = vsel %vm466, %v207, %v397
  %v529 = vsel %vm466, %v208, %v399
  %v530 = vsel %vm466, %v209, %v401
  %v531 = vld [vmem:[%s2] sm:$0x1]
  %v533 = vlaneseq
  %v534 = vshrl.u32 %v533, 7
  %v535 = vsub.s32 0, %v534
  %v536 = vrot.slane %v531, %v535
  %v539 = vsel %vm466, %v17, 0
  %v542 = vsel %vm466, %v18, 0
  %v545 = vsel %vm466, %v19, 0
  %v548 = vsel %vm466, %v20, 0
  %v551 = vsel %vm466, %v21, 0
  %v554 = vsel %vm466, %v22, 0
  %v557 = vsel %vm466, %v23, 0
  %v560 = vsel %vm466, %v24, 0
  %v563 = vsel %vm466, %v25, 0
  %v566 = vsel %vm466, %v26, 0
  %v569 = vsel %vm466, %v27, 0
  %v572 = vsel %vm466, %v28, 0
  %v575 = vsel %vm466, %v29, 0
  %v578 = vsel %vm466, %v30, 0
  %v581 = vsel %vm466, %v31, 0
  %v584 = vsel %vm466, %v32, 0
  %v587 = vsel %vm466, %v33, 0
  %v590 = vsel %vm466, %v34, 0
  %v593 = vsel %vm466, %v35, 0
  %v596 = vsel %vm466, %v36, 0
  %v599 = vsel %vm466, %v37, 0
  %v602 = vsel %vm466, %v38, 0
  %v605 = vsel %vm466, %v39, 0
  %v608 = vsel %vm466, %v40, 0
  %v611 = vsel %vm466, %v41, 0
  %v614 = vsel %vm466, %v42, 0
  %v617 = vsel %vm466, %v43, 0
  %v620 = vsel %vm466, %v44, 0
  %v623 = vsel %vm466, %v45, 0
  %v626 = vsel %vm466, %v46, 0
  %v629 = vsel %vm466, %v47, 0
  %v632 = vsel %vm466, %v48, 0
  %v635 = vsel %vm466, %v49, 0
  %v638 = vsel %vm466, %v50, 0
  %v641 = vsel %vm466, %v51, 0
  %v644 = vsel %vm466, %v52, 0
  %v647 = vsel %vm466, %v53, 0
  %v650 = vsel %vm466, %v54, 0
  %v653 = vsel %vm466, %v55, 0
  %v656 = vsel %vm466, %v56, 0
  %v659 = vsel %vm466, %v57, 0
  %v662 = vsel %vm466, %v58, 0
  %v665 = vsel %vm466, %v59, 0
  %v668 = vsel %vm466, %v60, 0
  %v671 = vsel %vm466, %v61, 0
  %v674 = vsel %vm466, %v62, 0
  %v677 = vsel %vm466, %v63, 0
  %v680 = vsel %vm466, %v64, 0
  %v683 = vsel %vm466, %v65, 0
  %v686 = vsel %vm466, %v66, 0
  %v689 = vsel %vm466, %v67, 0
  %v692 = vsel %vm466, %v68, 0
  %v695 = vsel %vm466, %v69, 0
  %v698 = vsel %vm466, %v70, 0
  %v701 = vsel %vm466, %v71, 0
  %v704 = vsel %vm466, %v72, 0
  %v707 = vsel %vm466, %v73, 0
  %v710 = vsel %vm466, %v74, 0
  %v713 = vsel %vm466, %v75, 0
  %v716 = vsel %vm466, %v76, 0
  %v719 = vsel %vm466, %v77, 0
  %v722 = vsel %vm466, %v78, 0
  %v725 = vsel %vm466, %v79, 0
  %v728 = vsel %vm466, %v80, 0
  %v731 = vsel %vm466, %v81, 0
  %v734 = vsel %vm466, %v82, 0
  %v737 = vsel %vm466, %v83, 0
  %v740 = vsel %vm466, %v84, 0
  %v743 = vsel %vm466, %v85, 0
  %v746 = vsel %vm466, %v86, 0
  %v749 = vsel %vm466, %v87, 0
  %v752 = vsel %vm466, %v88, 0
  %v755 = vsel %vm466, %v89, 0
  %v758 = vsel %vm466, %v90, 0
  %v761 = vsel %vm466, %v91, 0
  %v764 = vsel %vm466, %v92, 0
  %v767 = vsel %vm466, %v93, 0
  %v770 = vsel %vm466, %v94, 0
  %v773 = vsel %vm466, %v95, 0
  %v776 = vsel %vm466, %v96, 0
  %v779 = vsel %vm466, %v97, 0
  %v782 = vsel %vm466, %v98, 0
  %v785 = vsel %vm466, %v99, 0
  %v788 = vsel %vm466, %v100, 0
  %v791 = vsel %vm466, %v101, 0
  %v794 = vsel %vm466, %v102, 0
  %v797 = vsel %vm466, %v103, 0
  %v800 = vsel %vm466, %v104, 0
  %v803 = vsel %vm466, %v105, 0
  %v806 = vsel %vm466, %v106, 0
  %v809 = vsel %vm466, %v107, 0
  %v812 = vsel %vm466, %v108, 0
  %v815 = vsel %vm466, %v109, 0
  %v818 = vsel %vm466, %v110, 0
  %v821 = vsel %vm466, %v111, 0
  %v824 = vsel %vm466, %v112, 0
  %v827 = vsel %vm466, %v113, 0
  %v830 = vsel %vm466, %v114, 0
  %v833 = vsel %vm466, %v115, 0
  %v836 = vsel %vm466, %v116, 0
  %v839 = vsel %vm466, %v117, 0
  %v842 = vsel %vm466, %v118, 0
  %v845 = vsel %vm466, %v119, 0
  %v848 = vsel %vm466, %v120, 0
  %v851 = vsel %vm466, %v121, 0
  %v854 = vsel %vm466, %v122, 0
  %v857 = vsel %vm466, %v123, 0
  %v860 = vsel %vm466, %v124, 0
  %v863 = vsel %vm466, %v125, 0
  %v866 = vsel %vm466, %v126, 0
  %v869 = vsel %vm466, %v127, 0
  %v872 = vsel %vm466, %v128, 0
  %v875 = vsel %vm466, %v129, 0
  %v878 = vsel %vm466, %v130, 0
  %v881 = vsel %vm466, %v131, 0
  %v884 = vsel %vm466, %v132, 0
  %v887 = vsel %vm466, %v133, 0
  %v890 = vsel %vm466, %v134, 0
  %v893 = vsel %vm466, %v135, 0
  %v896 = vsel %vm466, %v136, 0
  %v899 = vsel %vm466, %v137, 0
  %v902 = vsel %vm466, %v138, 0
  %v905 = vsel %vm466, %v139, 0
  %v908 = vsel %vm466, %v140, 0
  %v911 = vsel %vm466, %v141, 0
  %v914 = vsel %vm466, %v142, 0
  %v917 = vsel %vm466, %v143, 0
  %v920 = vsel %vm466, %v144, 0
  %922 = vmatprep.subr.mxu0 0.0
  %923 = vmatpush1.msra.mxu0 0.0
  %924 = vmatprep.subr.mxu0 0.0
  %925 = vmatpush1.msra.mxu0 0.0
  %926 = vmatprep.subr.mxu0 0.0
  %927 = vmatpush1.msra.mxu0 0.0
  %928 = vmatprep.subr.mxu0 0.0
  %929 = vmatpush1.msra.mxu0 0.0
  %930 = vmatprep.subr.mxu0 0.0
  %931 = vmatpush1.msra.mxu0 0.0
  %932 = vmatprep.subr.mxu0 0.0
  %933 = vmatpush1.msra.mxu0 0.0
  %934 = vmatprep.subr.mxu0 0.0
  %935 = vmatpush1.msra.mxu0 0.0
  %936 = vmatprep.subr.mxu0 0.0
  %937 = vmatpush1.msra.mxu0 0.0
  %938 = vmatprep.subr.mxu0 0.0
  %939 = vmatpush1.msra.mxu0 0.0
  %940 = vmatprep.subr.mxu0 0.0
  %941 = vmatpush1.msra.mxu0 0.0
  %942 = vmatprep.subr.mxu0 0.0
  %943 = vmatpush1.msra.mxu0 0.0
  %944 = vmatprep.subr.mxu0 0.0
  %945 = vmatpush1.msra.mxu0 0.0
  %946 = vmatprep.subr.mxu0 0.0
  %947 = vmatpush1.msra.mxu0 0.0
  %948 = vmatprep.subr.mxu0 0.0
  %949 = vmatpush1.msra.mxu0 0.0
  %950 = vmatprep.subr.mxu0 0.0
  %951 = vmatpush1.msra.mxu0 0.0
  %952 = vmatprep.subr.mxu0 0.0
  %953 = vmatpush1.msra.mxu0 %v145
  %954 = vmatprep.subr.mxu0 0.0
  %955 = vmatpush2.msra.mxu0 0.0
  %956 = vmatprep.subr.mxu0 0.0
  %957 = vmatpush2.msra.mxu0 0.0
  %958 = vmatprep.subr.mxu0 0.0
  %959 = vmatpush2.msra.mxu0 0.0
  %960 = vmatprep.subr.mxu0 0.0
  %961 = vmatpush2.msra.mxu0 0.0
  %962 = vmatprep.subr.mxu0 0.0
  %963 = vmatpush2.msra.mxu0 0.0
  %964 = vmatprep.subr.mxu0 0.0
  %965 = vmatpush2.msra.mxu0 0.0
  %966 = vmatprep.subr.mxu0 0.0
  %967 = vmatpush2.msra.mxu0 0.0
  %968 = vmatprep.subr.mxu0 0.0
  %969 = vmatpush2.msra.mxu0 0.0
  %970 = vmatprep.subr.mxu0 0.0
  %971 = vmatpush2.msra.mxu0 0.0
  %972 = vmatprep.subr.mxu0 0.0
  %973 = vmatpush2.msra.mxu0 0.0
  %974 = vmatprep.subr.mxu0 0.0
  %975 = vmatpush2.msra.mxu0 0.0
  %976 = vmatprep.subr.mxu0 0.0
  %977 = vmatpush2.msra.mxu0 0.0
  %978 = vmatprep.subr.mxu0 0.0
  %979 = vmatpush2.msra.mxu0 0.0
  %980 = vmatprep.subr.mxu0 0.0
  %981 = vmatpush2.msra.mxu0 0.0
  %982 = vmatprep.subr.mxu0 0.0
  %983 = vmatpush2.msra.mxu0 0.0
  %984 = vmatprep.subr.mxu0 0.0
  %985 = vmatpush2.msra.mxu0 0.0
  %986 = vmatprep.mubr.f32.mxu0 0.0
  %987 = vmatmul.mubr.f32.gmra.mxu0 %v539
  %v988 = vpop.f32.mrf.mxu0
  %v989 = vadd.f32 %v536, %v988
  %v990 = vpop.f32.mrf.mxu0
  %991 = vmatprep.mubr.f32.mxu0 0.0
  %992 = vmatmul.mubr.f32.gmra.mxu0 %v542
  %v993 = vpop.f32.mrf.mxu0
  %v994 = vadd.f32 %v536, %v993
  %v995 = vpop.f32.mrf.mxu0
  %996 = vmatprep.mubr.f32.mxu0 0.0
  %997 = vmatmul.mubr.f32.gmra.mxu0 %v545
  %v998 = vpop.f32.mrf.mxu0
  %v999 = vadd.f32 %v536, %v998
  %v1000 = vpop.f32.mrf.mxu0
  %1001 = vmatprep.mubr.f32.mxu0 0.0
  %1002 = vmatmul.mubr.f32.gmra.mxu0 %v548
  %v1003 = vpop.f32.mrf.mxu0
  %v1004 = vadd.f32 %v536, %v1003
  %v1005 = vpop.f32.mrf.mxu0
  %1006 = vmatprep.mubr.f32.mxu0 0.0
  %1007 = vmatmul.mubr.f32.gmra.mxu0 %v551
  %v1008 = vpop.f32.mrf.mxu0
  %v1009 = vadd.f32 %v536, %v1008
  %v1010 = vpop.f32.mrf.mxu0
  %1011 = vmatprep.mubr.f32.mxu0 0.0
  %1012 = vmatmul.mubr.f32.gmra.mxu0 %v554
  %v1013 = vpop.f32.mrf.mxu0
  %v1014 = vadd.f32 %v536, %v1013
  %v1015 = vpop.f32.mrf.mxu0
  %1016 = vmatprep.mubr.f32.mxu0 0.0
  %1017 = vmatmul.mubr.f32.gmra.mxu0 %v557
  %v1018 = vpop.f32.mrf.mxu0
  %v1019 = vadd.f32 %v536, %v1018
  %v1020 = vpop.f32.mrf.mxu0
  %1021 = vmatprep.mubr.f32.mxu0 0.0
  %1022 = vmatmul.mubr.f32.gmra.mxu0 %v560
  %v1023 = vpop.f32.mrf.mxu0
  %v1024 = vadd.f32 %v536, %v1023
  %v1025 = vpop.f32.mrf.mxu0
  %1026 = vmatprep.mubr.f32.mxu0 0.0
  %1027 = vmatmul.mubr.f32.gmra.mxu0 %v563
  %v1028 = vpop.f32.mrf.mxu0
  %v1029 = vadd.f32 %v536, %v1028
  %v1030 = vpop.f32.mrf.mxu0
  %1031 = vmatprep.mubr.f32.mxu0 0.0
  %1032 = vmatmul.mubr.f32.gmra.mxu0 %v566
  %v1033 = vpop.f32.mrf.mxu0
  %v1034 = vadd.f32 %v536, %v1033
  %v1035 = vpop.f32.mrf.mxu0
  %1036 = vmatprep.mubr.f32.mxu0 0.0
  %1037 = vmatmul.mubr.f32.gmra.mxu0 %v569
  %v1038 = vpop.f32.mrf.mxu0
  %v1039 = vadd.f32 %v536, %v1038
  %v1040 = vpop.f32.mrf.mxu0
  %1041 = vmatprep.mubr.f32.mxu0 0.0
  %1042 = vmatmul.mubr.f32.gmra.mxu0 %v572
  %v1043 = vpop.f32.mrf.mxu0
  %v1044 = vadd.f32 %v536, %v1043
  %v1045 = vpop.f32.mrf.mxu0
  %1046 = vmatprep.mubr.f32.mxu0 0.0
  %1047 = vmatmul.mubr.f32.gmra.mxu0 %v575
  %v1048 = vpop.f32.mrf.mxu0
  %v1049 = vadd.f32 %v536, %v1048
  %v1050 = vpop.f32.mrf.mxu0
  %1051 = vmatprep.mubr.f32.mxu0 0.0
  %1052 = vmatmul.mubr.f32.gmra.mxu0 %v578
  %v1053 = vpop.f32.mrf.mxu0
  %v1054 = vadd.f32 %v536, %v1053
  %v1055 = vpop.f32.mrf.mxu0
  %1056 = vmatprep.mubr.f32.mxu0 0.0
  %1057 = vmatmul.mubr.f32.gmra.mxu0 %v581
  %v1058 = vpop.f32.mrf.mxu0
  %v1059 = vadd.f32 %v536, %v1058
  %v1060 = vpop.f32.mrf.mxu0
  %1061 = vmatprep.mubr.f32.mxu0 0.0
  %1062 = vmatmul.mubr.f32.gmra.mxu0 %v584
  %v1063 = vpop.f32.mrf.mxu0
  %v1064 = vadd.f32 %v536, %v1063
  %v1065 = vpop.f32.mrf.mxu0
  %1066 = vmatprep.mubr.f32.mxu0 0.0
  %1067 = vmatmul.mubr.f32.gmra.mxu0 %v587
  %v1068 = vpop.f32.mrf.mxu0
  %v1069 = vadd.f32 %v536, %v1068
  %v1070 = vpop.f32.mrf.mxu0
  %1071 = vmatprep.mubr.f32.mxu0 0.0
  %1072 = vmatmul.mubr.f32.gmra.mxu0 %v590
  %v1073 = vpop.f32.mrf.mxu0
  %v1074 = vadd.f32 %v536, %v1073
  %v1075 = vpop.f32.mrf.mxu0
  %1076 = vmatprep.mubr.f32.mxu0 0.0
  %1077 = vmatmul.mubr.f32.gmra.mxu0 %v593
  %v1078 = vpop.f32.mrf.mxu0
  %v1079 = vadd.f32 %v536, %v1078
  %v1080 = vpop.f32.mrf.mxu0
  %1081 = vmatprep.mubr.f32.mxu0 0.0
  %1082 = vmatmul.mubr.f32.gmra.mxu0 %v596
  %v1083 = vpop.f32.mrf.mxu0
  %v1084 = vadd.f32 %v536, %v1083
  %v1085 = vpop.f32.mrf.mxu0
  %1086 = vmatprep.mubr.f32.mxu0 0.0
  %1087 = vmatmul.mubr.f32.gmra.mxu0 %v599
  %v1088 = vpop.f32.mrf.mxu0
  %v1089 = vadd.f32 %v536, %v1088
  %v1090 = vpop.f32.mrf.mxu0
  %1091 = vmatprep.mubr.f32.mxu0 0.0
  %1092 = vmatmul.mubr.f32.gmra.mxu0 %v602
  %v1093 = vpop.f32.mrf.mxu0
  %v1094 = vadd.f32 %v536, %v1093
  %v1095 = vpop.f32.mrf.mxu0
  %1096 = vmatprep.mubr.f32.mxu0 0.0
  %1097 = vmatmul.mubr.f32.gmra.mxu0 %v605
  %v1098 = vpop.f32.mrf.mxu0
  %v1099 = vadd.f32 %v536, %v1098
  %v1100 = vpop.f32.mrf.mxu0
  %1101 = vmatprep.mubr.f32.mxu0 0.0
  %1102 = vmatmul.mubr.f32.gmra.mxu0 %v608
  %v1103 = vpop.f32.mrf.mxu0
  %v1104 = vadd.f32 %v536, %v1103
  %v1105 = vpop.f32.mrf.mxu0
  %1106 = vmatprep.mubr.f32.mxu0 0.0
  %1107 = vmatmul.mubr.f32.gmra.mxu0 %v611
  %v1108 = vpop.f32.mrf.mxu0
  %v1109 = vadd.f32 %v536, %v1108
  %v1110 = vpop.f32.mrf.mxu0
  %1111 = vmatprep.mubr.f32.mxu0 0.0
  %1112 = vmatmul.mubr.f32.gmra.mxu0 %v614
  %v1113 = vpop.f32.mrf.mxu0
  %v1114 = vadd.f32 %v536, %v1113
  %v1115 = vpop.f32.mrf.mxu0
  %1116 = vmatprep.mubr.f32.mxu0 0.0
  %1117 = vmatmul.mubr.f32.gmra.mxu0 %v617
  %v1118 = vpop.f32.mrf.mxu0
  %v1119 = vadd.f32 %v536, %v1118
  %v1120 = vpop.f32.mrf.mxu0
  %1121 = vmatprep.mubr.f32.mxu0 0.0
  %1122 = vmatmul.mubr.f32.gmra.mxu0 %v620
  %v1123 = vpop.f32.mrf.mxu0
  %v1124 = vadd.f32 %v536, %v1123
  %v1125 = vpop.f32.mrf.mxu0
  %1126 = vmatprep.mubr.f32.mxu0 0.0
  %1127 = vmatmul.mubr.f32.gmra.mxu0 %v623
  %v1128 = vpop.f32.mrf.mxu0
  %v1129 = vadd.f32 %v536, %v1128
  %v1130 = vpop.f32.mrf.mxu0
  %1131 = vmatprep.mubr.f32.mxu0 0.0
  %1132 = vmatmul.mubr.f32.gmra.mxu0 %v626
  %v1133 = vpop.f32.mrf.mxu0
  %v1134 = vadd.f32 %v536, %v1133
  %v1135 = vpop.f32.mrf.mxu0
  %1136 = vmatprep.mubr.f32.mxu0 0.0
  %1137 = vmatmul.mubr.f32.gmra.mxu0 %v629
  %v1138 = vpop.f32.mrf.mxu0
  %v1139 = vadd.f32 %v536, %v1138
  %v1140 = vpop.f32.mrf.mxu0
  %1141 = vmatprep.mubr.f32.mxu0 0.0
  %1142 = vmatmul.mubr.f32.gmra.mxu0 %v632
  %v1143 = vpop.f32.mrf.mxu0
  %v1144 = vadd.f32 %v536, %v1143
  %v1145 = vpop.f32.mrf.mxu0
  %1146 = vmatprep.mubr.f32.mxu0 0.0
  %1147 = vmatmul.mubr.f32.gmra.mxu0 %v635
  %v1148 = vpop.f32.mrf.mxu0
  %v1149 = vadd.f32 %v536, %v1148
  %v1150 = vpop.f32.mrf.mxu0
  %1151 = vmatprep.mubr.f32.mxu0 0.0
  %1152 = vmatmul.mubr.f32.gmra.mxu0 %v638
  %v1153 = vpop.f32.mrf.mxu0
  %v1154 = vadd.f32 %v536, %v1153
  %v1155 = vpop.f32.mrf.mxu0
  %1156 = vmatprep.mubr.f32.mxu0 0.0
  %1157 = vmatmul.mubr.f32.gmra.mxu0 %v641
  %v1158 = vpop.f32.mrf.mxu0
  %v1159 = vadd.f32 %v536, %v1158
  %v1160 = vpop.f32.mrf.mxu0
  %1161 = vmatprep.mubr.f32.mxu0 0.0
  %1162 = vmatmul.mubr.f32.gmra.mxu0 %v644
  %v1163 = vpop.f32.mrf.mxu0
  %v1164 = vadd.f32 %v536, %v1163
  %v1165 = vpop.f32.mrf.mxu0
  %1166 = vmatprep.mubr.f32.mxu0 0.0
  %1167 = vmatmul.mubr.f32.gmra.mxu0 %v647
  %v1168 = vpop.f32.mrf.mxu0
  %v1169 = vadd.f32 %v536, %v1168
  %v1170 = vpop.f32.mrf.mxu0
  %1171 = vmatprep.mubr.f32.mxu0 0.0
  %1172 = vmatmul.mubr.f32.gmra.mxu0 %v650
  %v1173 = vpop.f32.mrf.mxu0
  %v1174 = vadd.f32 %v536, %v1173
  %v1175 = vpop.f32.mrf.mxu0
  %1176 = vmatprep.mubr.f32.mxu0 0.0
  %1177 = vmatmul.mubr.f32.gmra.mxu0 %v653
  %v1178 = vpop.f32.mrf.mxu0
  %v1179 = vadd.f32 %v536, %v1178
  %v1180 = vpop.f32.mrf.mxu0
  %1181 = vmatprep.mubr.f32.mxu0 0.0
  %1182 = vmatmul.mubr.f32.gmra.mxu0 %v656
  %v1183 = vpop.f32.mrf.mxu0
  %v1184 = vadd.f32 %v536, %v1183
  %v1185 = vpop.f32.mrf.mxu0
  %1186 = vmatprep.mubr.f32.mxu0 0.0
  %1187 = vmatmul.mubr.f32.gmra.mxu0 %v659
  %v1188 = vpop.f32.mrf.mxu0
  %v1189 = vadd.f32 %v536, %v1188
  %v1190 = vpop.f32.mrf.mxu0
  %1191 = vmatprep.mubr.f32.mxu0 0.0
  %1192 = vmatmul.mubr.f32.gmra.mxu0 %v662
  %v1193 = vpop.f32.mrf.mxu0
  %v1194 = vadd.f32 %v536, %v1193
  %v1195 = vpop.f32.mrf.mxu0
  %1196 = vmatprep.mubr.f32.mxu0 0.0
  %1197 = vmatmul.mubr.f32.gmra.mxu0 %v665
  %v1198 = vpop.f32.mrf.mxu0
  %v1199 = vadd.f32 %v536, %v1198
  %v1200 = vpop.f32.mrf.mxu0
  %1201 = vmatprep.mubr.f32.mxu0 0.0
  %1202 = vmatmul.mubr.f32.gmra.mxu0 %v668
  %v1203 = vpop.f32.mrf.mxu0
  %v1204 = vadd.f32 %v536, %v1203
  %v1205 = vpop.f32.mrf.mxu0
  %1206 = vmatprep.mubr.f32.mxu0 0.0
  %1207 = vmatmul.mubr.f32.gmra.mxu0 %v671
  %v1208 = vpop.f32.mrf.mxu0
  %v1209 = vadd.f32 %v536, %v1208
  %v1210 = vpop.f32.mrf.mxu0
  %1211 = vmatprep.mubr.f32.mxu0 0.0
  %1212 = vmatmul.mubr.f32.gmra.mxu0 %v674
  %v1213 = vpop.f32.mrf.mxu0
  %v1214 = vadd.f32 %v536, %v1213
  %v1215 = vpop.f32.mrf.mxu0
  %1216 = vmatprep.mubr.f32.mxu0 0.0
  %1217 = vmatmul.mubr.f32.gmra.mxu0 %v677
  %v1218 = vpop.f32.mrf.mxu0
  %v1219 = vadd.f32 %v536, %v1218
  %v1220 = vpop.f32.mrf.mxu0
  %1221 = vmatprep.mubr.f32.mxu0 0.0
  %1222 = vmatmul.mubr.f32.gmra.mxu0 %v680
  %v1223 = vpop.f32.mrf.mxu0
  %v1224 = vadd.f32 %v536, %v1223
  %v1225 = vpop.f32.mrf.mxu0
  %1226 = vmatprep.mubr.f32.mxu0 0.0
  %1227 = vmatmul.mubr.f32.gmra.mxu0 %v683
  %v1228 = vpop.f32.mrf.mxu0
  %v1229 = vadd.f32 %v536, %v1228
  %v1230 = vpop.f32.mrf.mxu0
  %1231 = vmatprep.mubr.f32.mxu0 0.0
  %1232 = vmatmul.mubr.f32.gmra.mxu0 %v686
  %v1233 = vpop.f32.mrf.mxu0
  %v1234 = vadd.f32 %v536, %v1233
  %v1235 = vpop.f32.mrf.mxu0
  %1236 = vmatprep.mubr.f32.mxu0 0.0
  %1237 = vmatmul.mubr.f32.gmra.mxu0 %v689
  %v1238 = vpop.f32.mrf.mxu0
  %v1239 = vadd.f32 %v536, %v1238
  %v1240 = vpop.f32.mrf.mxu0
  %1241 = vmatprep.mubr.f32.mxu0 0.0
  %1242 = vmatmul.mubr.f32.gmra.mxu0 %v692
  %v1243 = vpop.f32.mrf.mxu0
  %v1244 = vadd.f32 %v536, %v1243
  %v1245 = vpop.f32.mrf.mxu0
  %1246 = vmatprep.mubr.f32.mxu0 0.0
  %1247 = vmatmul.mubr.f32.gmra.mxu0 %v695
  %v1248 = vpop.f32.mrf.mxu0
  %v1249 = vadd.f32 %v536, %v1248
  %v1250 = vpop.f32.mrf.mxu0
  %1251 = vmatprep.mubr.f32.mxu0 0.0
  %1252 = vmatmul.mubr.f32.gmra.mxu0 %v698
  %v1253 = vpop.f32.mrf.mxu0
  %v1254 = vadd.f32 %v536, %v1253
  %v1255 = vpop.f32.mrf.mxu0
  %1256 = vmatprep.mubr.f32.mxu0 0.0
  %1257 = vmatmul.mubr.f32.gmra.mxu0 %v701
  %v1258 = vpop.f32.mrf.mxu0
  %v1259 = vadd.f32 %v536, %v1258
  %v1260 = vpop.f32.mrf.mxu0
  %1261 = vmatprep.mubr.f32.mxu0 0.0
  %1262 = vmatmul.mubr.f32.gmra.mxu0 %v704
  %v1263 = vpop.f32.mrf.mxu0
  %v1264 = vadd.f32 %v536, %v1263
  %v1265 = vpop.f32.mrf.mxu0
  %1266 = vmatprep.mubr.f32.mxu0 0.0
  %1267 = vmatmul.mubr.f32.gmra.mxu0 %v707
  %v1268 = vpop.f32.mrf.mxu0
  %v1269 = vadd.f32 %v536, %v1268
  %v1270 = vpop.f32.mrf.mxu0
  %1271 = vmatprep.mubr.f32.mxu0 0.0
  %1272 = vmatmul.mubr.f32.gmra.mxu0 %v710
  %v1273 = vpop.f32.mrf.mxu0
  %v1274 = vadd.f32 %v536, %v1273
  %v1275 = vpop.f32.mrf.mxu0
  %1276 = vmatprep.mubr.f32.mxu0 0.0
  %1277 = vmatmul.mubr.f32.gmra.mxu0 %v713
  %v1278 = vpop.f32.mrf.mxu0
  %v1279 = vadd.f32 %v536, %v1278
  %v1280 = vpop.f32.mrf.mxu0
  %1281 = vmatprep.mubr.f32.mxu0 0.0
  %1282 = vmatmul.mubr.f32.gmra.mxu0 %v716
  %v1283 = vpop.f32.mrf.mxu0
  %v1284 = vadd.f32 %v536, %v1283
  %v1285 = vpop.f32.mrf.mxu0
  %1286 = vmatprep.mubr.f32.mxu0 0.0
  %1287 = vmatmul.mubr.f32.gmra.mxu0 %v719
  %v1288 = vpop.f32.mrf.mxu0
  %v1289 = vadd.f32 %v536, %v1288
  %v1290 = vpop.f32.mrf.mxu0
  %1291 = vmatprep.mubr.f32.mxu0 0.0
  %1292 = vmatmul.mubr.f32.gmra.mxu0 %v722
  %v1293 = vpop.f32.mrf.mxu0
  %v1294 = vadd.f32 %v536, %v1293
  %v1295 = vpop.f32.mrf.mxu0
  %1296 = vmatprep.mubr.f32.mxu0 0.0
  %1297 = vmatmul.mubr.f32.gmra.mxu0 %v725
  %v1298 = vpop.f32.mrf.mxu0
  %v1299 = vadd.f32 %v536, %v1298
  %v1300 = vpop.f32.mrf.mxu0
  %1301 = vmatprep.mubr.f32.mxu0 0.0
  %1302 = vmatmul.mubr.f32.gmra.mxu0 %v728
  %v1303 = vpop.f32.mrf.mxu0
  %v1304 = vadd.f32 %v536, %v1303
  %v1305 = vpop.f32.mrf.mxu0
  %1306 = vmatprep.mubr.f32.mxu0 0.0
  %1307 = vmatmul.mubr.f32.gmra.mxu0 %v731
  %v1308 = vpop.f32.mrf.mxu0
  %v1309 = vadd.f32 %v536, %v1308
  %v1310 = vpop.f32.mrf.mxu0
  %1311 = vmatprep.mubr.f32.mxu0 0.0
  %1312 = vmatmul.mubr.f32.gmra.mxu0 %v734
  %v1313 = vpop.f32.mrf.mxu0
  %v1314 = vadd.f32 %v536, %v1313
  %v1315 = vpop.f32.mrf.mxu0
  %1316 = vmatprep.mubr.f32.mxu0 0.0
  %1317 = vmatmul.mubr.f32.gmra.mxu0 %v737
  %v1318 = vpop.f32.mrf.mxu0
  %v1319 = vadd.f32 %v536, %v1318
  %v1320 = vpop.f32.mrf.mxu0
  %1321 = vmatprep.mubr.f32.mxu0 0.0
  %1322 = vmatmul.mubr.f32.gmra.mxu0 %v740
  %v1323 = vpop.f32.mrf.mxu0
  %v1324 = vadd.f32 %v536, %v1323
  %v1325 = vpop.f32.mrf.mxu0
  %1326 = vmatprep.mubr.f32.mxu0 0.0
  %1327 = vmatmul.mubr.f32.gmra.mxu0 %v743
  %v1328 = vpop.f32.mrf.mxu0
  %v1329 = vadd.f32 %v536, %v1328
  %v1330 = vpop.f32.mrf.mxu0
  %1331 = vmatprep.mubr.f32.mxu0 0.0
  %1332 = vmatmul.mubr.f32.gmra.mxu0 %v746
  %v1333 = vpop.f32.mrf.mxu0
  %v1334 = vadd.f32 %v536, %v1333
  %v1335 = vpop.f32.mrf.mxu0
  %1336 = vmatprep.mubr.f32.mxu0 0.0
  %1337 = vmatmul.mubr.f32.gmra.mxu0 %v749
  %v1338 = vpop.f32.mrf.mxu0
  %v1339 = vadd.f32 %v536, %v1338
  %v1340 = vpop.f32.mrf.mxu0
  %1341 = vmatprep.mubr.f32.mxu0 0.0
  %1342 = vmatmul.mubr.f32.gmra.mxu0 %v752
  %v1343 = vpop.f32.mrf.mxu0
  %v1344 = vadd.f32 %v536, %v1343
  %v1345 = vpop.f32.mrf.mxu0
  %1346 = vmatprep.mubr.f32.mxu0 0.0
  %1347 = vmatmul.mubr.f32.gmra.mxu0 %v755
  %v1348 = vpop.f32.mrf.mxu0
  %v1349 = vadd.f32 %v536, %v1348
  %v1350 = vpop.f32.mrf.mxu0
  %1351 = vmatprep.mubr.f32.mxu0 0.0
  %1352 = vmatmul.mubr.f32.gmra.mxu0 %v758
  %v1353 = vpop.f32.mrf.mxu0
  %v1354 = vadd.f32 %v536, %v1353
  %v1355 = vpop.f32.mrf.mxu0
  %1356 = vmatprep.mubr.f32.mxu0 0.0
  %1357 = vmatmul.mubr.f32.gmra.mxu0 %v761
  %v1358 = vpop.f32.mrf.mxu0
  %v1359 = vadd.f32 %v536, %v1358
  %v1360 = vpop.f32.mrf.mxu0
  %1361 = vmatprep.mubr.f32.mxu0 0.0
  %1362 = vmatmul.mubr.f32.gmra.mxu0 %v764
  %v1363 = vpop.f32.mrf.mxu0
  %v1364 = vadd.f32 %v536, %v1363
  %v1365 = vpop.f32.mrf.mxu0
  %1366 = vmatprep.mubr.f32.mxu0 0.0
  %1367 = vmatmul.mubr.f32.gmra.mxu0 %v767
  %v1368 = vpop.f32.mrf.mxu0
  %v1369 = vadd.f32 %v536, %v1368
  %v1370 = vpop.f32.mrf.mxu0
  %1371 = vmatprep.mubr.f32.mxu0 0.0
  %1372 = vmatmul.mubr.f32.gmra.mxu0 %v770
  %v1373 = vpop.f32.mrf.mxu0
  %v1374 = vadd.f32 %v536, %v1373
  %v1375 = vpop.f32.mrf.mxu0
  %1376 = vmatprep.mubr.f32.mxu0 0.0
  %1377 = vmatmul.mubr.f32.gmra.mxu0 %v773
  %v1378 = vpop.f32.mrf.mxu0
  %v1379 = vadd.f32 %v536, %v1378
  %v1380 = vpop.f32.mrf.mxu0
  %1381 = vmatprep.mubr.f32.mxu0 0.0
  %1382 = vmatmul.mubr.f32.gmra.mxu0 %v776
  %v1383 = vpop.f32.mrf.mxu0
  %v1384 = vadd.f32 %v536, %v1383
  %v1385 = vpop.f32.mrf.mxu0
  %1386 = vmatprep.mubr.f32.mxu0 0.0
  %1387 = vmatmul.mubr.f32.gmra.mxu0 %v779
  %v1388 = vpop.f32.mrf.mxu0
  %v1389 = vadd.f32 %v536, %v1388
  %v1390 = vpop.f32.mrf.mxu0
  %1391 = vmatprep.mubr.f32.mxu0 0.0
  %1392 = vmatmul.mubr.f32.gmra.mxu0 %v782
  %v1393 = vpop.f32.mrf.mxu0
  %v1394 = vadd.f32 %v536, %v1393
  %v1395 = vpop.f32.mrf.mxu0
  %1396 = vmatprep.mubr.f32.mxu0 0.0
  %1397 = vmatmul.mubr.f32.gmra.mxu0 %v785
  %v1398 = vpop.f32.mrf.mxu0
  %v1399 = vadd.f32 %v536, %v1398
  %v1400 = vpop.f32.mrf.mxu0
  %1401 = vmatprep.mubr.f32.mxu0 0.0
  %1402 = vmatmul.mubr.f32.gmra.mxu0 %v788
  %v1403 = vpop.f32.mrf.mxu0
  %v1404 = vadd.f32 %v536, %v1403
  %v1405 = vpop.f32.mrf.mxu0
  %1406 = vmatprep.mubr.f32.mxu0 0.0
  %1407 = vmatmul.mubr.f32.gmra.mxu0 %v791
  %v1408 = vpop.f32.mrf.mxu0
  %v1409 = vadd.f32 %v536, %v1408
  %v1410 = vpop.f32.mrf.mxu0
  %1411 = vmatprep.mubr.f32.mxu0 0.0
  %1412 = vmatmul.mubr.f32.gmra.mxu0 %v794
  %v1413 = vpop.f32.mrf.mxu0
  %v1414 = vadd.f32 %v536, %v1413
  %v1415 = vpop.f32.mrf.mxu0
  %1416 = vmatprep.mubr.f32.mxu0 0.0
  %1417 = vmatmul.mubr.f32.gmra.mxu0 %v797
  %v1418 = vpop.f32.mrf.mxu0
  %v1419 = vadd.f32 %v536, %v1418
  %v1420 = vpop.f32.mrf.mxu0
  %1421 = vmatprep.mubr.f32.mxu0 0.0
  %1422 = vmatmul.mubr.f32.gmra.mxu0 %v800
  %v1423 = vpop.f32.mrf.mxu0
  %v1424 = vadd.f32 %v536, %v1423
  %v1425 = vpop.f32.mrf.mxu0
  %1426 = vmatprep.mubr.f32.mxu0 0.0
  %1427 = vmatmul.mubr.f32.gmra.mxu0 %v803
  %v1428 = vpop.f32.mrf.mxu0
  %v1429 = vadd.f32 %v536, %v1428
  %v1430 = vpop.f32.mrf.mxu0
  %1431 = vmatprep.mubr.f32.mxu0 0.0
  %1432 = vmatmul.mubr.f32.gmra.mxu0 %v806
  %v1433 = vpop.f32.mrf.mxu0
  %v1434 = vadd.f32 %v536, %v1433
  %v1435 = vpop.f32.mrf.mxu0
  %1436 = vmatprep.mubr.f32.mxu0 0.0
  %1437 = vmatmul.mubr.f32.gmra.mxu0 %v809
  %v1438 = vpop.f32.mrf.mxu0
  %v1439 = vadd.f32 %v536, %v1438
  %v1440 = vpop.f32.mrf.mxu0
  %1441 = vmatprep.mubr.f32.mxu0 0.0
  %1442 = vmatmul.mubr.f32.gmra.mxu0 %v812
  %v1443 = vpop.f32.mrf.mxu0
  %v1444 = vadd.f32 %v536, %v1443
  %v1445 = vpop.f32.mrf.mxu0
  %1446 = vmatprep.mubr.f32.mxu0 0.0
  %1447 = vmatmul.mubr.f32.gmra.mxu0 %v815
  %v1448 = vpop.f32.mrf.mxu0
  %v1449 = vadd.f32 %v536, %v1448
  %v1450 = vpop.f32.mrf.mxu0
  %1451 = vmatprep.mubr.f32.mxu0 0.0
  %1452 = vmatmul.mubr.f32.gmra.mxu0 %v818
  %v1453 = vpop.f32.mrf.mxu0
  %v1454 = vadd.f32 %v536, %v1453
  %v1455 = vpop.f32.mrf.mxu0
  %1456 = vmatprep.mubr.f32.mxu0 0.0
  %1457 = vmatmul.mubr.f32.gmra.mxu0 %v821
  %v1458 = vpop.f32.mrf.mxu0
  %v1459 = vadd.f32 %v536, %v1458
  %v1460 = vpop.f32.mrf.mxu0
  %1461 = vmatprep.mubr.f32.mxu0 0.0
  %1462 = vmatmul.mubr.f32.gmra.mxu0 %v824
  %v1463 = vpop.f32.mrf.mxu0
  %v1464 = vadd.f32 %v536, %v1463
  %v1465 = vpop.f32.mrf.mxu0
  %1466 = vmatprep.mubr.f32.mxu0 0.0
  %1467 = vmatmul.mubr.f32.gmra.mxu0 %v827
  %v1468 = vpop.f32.mrf.mxu0
  %v1469 = vadd.f32 %v536, %v1468
  %v1470 = vpop.f32.mrf.mxu0
  %1471 = vmatprep.mubr.f32.mxu0 0.0
  %1472 = vmatmul.mubr.f32.gmra.mxu0 %v830
  %v1473 = vpop.f32.mrf.mxu0
  %v1474 = vadd.f32 %v536, %v1473
  %v1475 = vpop.f32.mrf.mxu0
  %1476 = vmatprep.mubr.f32.mxu0 0.0
  %1477 = vmatmul.mubr.f32.gmra.mxu0 %v833
  %v1478 = vpop.f32.mrf.mxu0
  %v1479 = vadd.f32 %v536, %v1478
  %v1480 = vpop.f32.mrf.mxu0
  %1481 = vmatprep.mubr.f32.mxu0 0.0
  %1482 = vmatmul.mubr.f32.gmra.mxu0 %v836
  %v1483 = vpop.f32.mrf.mxu0
  %v1484 = vadd.f32 %v536, %v1483
  %v1485 = vpop.f32.mrf.mxu0
  %1486 = vmatprep.mubr.f32.mxu0 0.0
  %1487 = vmatmul.mubr.f32.gmra.mxu0 %v839
  %v1488 = vpop.f32.mrf.mxu0
  %v1489 = vadd.f32 %v536, %v1488
  %v1490 = vpop.f32.mrf.mxu0
  %1491 = vmatprep.mubr.f32.mxu0 0.0
  %1492 = vmatmul.mubr.f32.gmra.mxu0 %v842
  %v1493 = vpop.f32.mrf.mxu0
  %v1494 = vadd.f32 %v536, %v1493
  %v1495 = vpop.f32.mrf.mxu0
  %1496 = vmatprep.mubr.f32.mxu0 0.0
  %1497 = vmatmul.mubr.f32.gmra.mxu0 %v845
  %v1498 = vpop.f32.mrf.mxu0
  %v1499 = vadd.f32 %v536, %v1498
  %v1500 = vpop.f32.mrf.mxu0
  %1501 = vmatprep.mubr.f32.mxu0 0.0
  %1502 = vmatmul.mubr.f32.gmra.mxu0 %v848
  %v1503 = vpop.f32.mrf.mxu0
  %v1504 = vadd.f32 %v536, %v1503
  %v1505 = vpop.f32.mrf.mxu0
  %1506 = vmatprep.mubr.f32.mxu0 0.0
  %1507 = vmatmul.mubr.f32.gmra.mxu0 %v851
  %v1508 = vpop.f32.mrf.mxu0
  %v1509 = vadd.f32 %v536, %v1508
  %v1510 = vpop.f32.mrf.mxu0
  %1511 = vmatprep.mubr.f32.mxu0 0.0
  %1512 = vmatmul.mubr.f32.gmra.mxu0 %v854
  %v1513 = vpop.f32.mrf.mxu0
  %v1514 = vadd.f32 %v536, %v1513
  %v1515 = vpop.f32.mrf.mxu0
  %1516 = vmatprep.mubr.f32.mxu0 0.0
  %1517 = vmatmul.mubr.f32.gmra.mxu0 %v857
  %v1518 = vpop.f32.mrf.mxu0
  %v1519 = vadd.f32 %v536, %v1518
  %v1520 = vpop.f32.mrf.mxu0
  %1521 = vmatprep.mubr.f32.mxu0 0.0
  %1522 = vmatmul.mubr.f32.gmra.mxu0 %v860
  %v1523 = vpop.f32.mrf.mxu0
  %v1524 = vadd.f32 %v536, %v1523
  %v1525 = vpop.f32.mrf.mxu0
  %1526 = vmatprep.mubr.f32.mxu0 0.0
  %1527 = vmatmul.mubr.f32.gmra.mxu0 %v863
  %v1528 = vpop.f32.mrf.mxu0
  %v1529 = vadd.f32 %v536, %v1528
  %v1530 = vpop.f32.mrf.mxu0
  %1531 = vmatprep.mubr.f32.mxu0 0.0
  %1532 = vmatmul.mubr.f32.gmra.mxu0 %v866
  %v1533 = vpop.f32.mrf.mxu0
  %v1534 = vadd.f32 %v536, %v1533
  %v1535 = vpop.f32.mrf.mxu0
  %1536 = vmatprep.mubr.f32.mxu0 0.0
  %1537 = vmatmul.mubr.f32.gmra.mxu0 %v869
  %v1538 = vpop.f32.mrf.mxu0
  %v1539 = vadd.f32 %v536, %v1538
  %v1540 = vpop.f32.mrf.mxu0
  %1541 = vmatprep.mubr.f32.mxu0 0.0
  %1542 = vmatmul.mubr.f32.gmra.mxu0 %v872
  %v1543 = vpop.f32.mrf.mxu0
  %v1544 = vadd.f32 %v536, %v1543
  %v1545 = vpop.f32.mrf.mxu0
  %1546 = vmatprep.mubr.f32.mxu0 0.0
  %1547 = vmatmul.mubr.f32.gmra.mxu0 %v875
  %v1548 = vpop.f32.mrf.mxu0
  %v1549 = vadd.f32 %v536, %v1548
  %v1550 = vpop.f32.mrf.mxu0
  %1551 = vmatprep.mubr.f32.mxu0 0.0
  %1552 = vmatmul.mubr.f32.gmra.mxu0 %v878
  %v1553 = vpop.f32.mrf.mxu0
  %v1554 = vadd.f32 %v536, %v1553
  %v1555 = vpop.f32.mrf.mxu0
  %1556 = vmatprep.mubr.f32.mxu0 0.0
  %1557 = vmatmul.mubr.f32.gmra.mxu0 %v881
  %v1558 = vpop.f32.mrf.mxu0
  %v1559 = vadd.f32 %v536, %v1558
  %v1560 = vpop.f32.mrf.mxu0
  %1561 = vmatprep.mubr.f32.mxu0 0.0
  %1562 = vmatmul.mubr.f32.gmra.mxu0 %v884
  %v1563 = vpop.f32.mrf.mxu0
  %v1564 = vadd.f32 %v536, %v1563
  %v1565 = vpop.f32.mrf.mxu0
  %1566 = vmatprep.mubr.f32.mxu0 0.0
  %1567 = vmatmul.mubr.f32.gmra.mxu0 %v887
  %v1568 = vpop.f32.mrf.mxu0
  %v1569 = vadd.f32 %v536, %v1568
  %v1570 = vpop.f32.mrf.mxu0
  %1571 = vmatprep.mubr.f32.mxu0 0.0
  %1572 = vmatmul.mubr.f32.gmra.mxu0 %v890
  %v1573 = vpop.f32.mrf.mxu0
  %v1574 = vadd.f32 %v536, %v1573
  %v1575 = vpop.f32.mrf.mxu0
  %1576 = vmatprep.mubr.f32.mxu0 0.0
  %1577 = vmatmul.mubr.f32.gmra.mxu0 %v893
  %v1578 = vpop.f32.mrf.mxu0
  %v1579 = vadd.f32 %v536, %v1578
  %v1580 = vpop.f32.mrf.mxu0
  %1581 = vmatprep.mubr.f32.mxu0 0.0
  %1582 = vmatmul.mubr.f32.gmra.mxu0 %v896
  %v1583 = vpop.f32.mrf.mxu0
  %v1584 = vadd.f32 %v536, %v1583
  %v1585 = vpop.f32.mrf.mxu0
  %1586 = vmatprep.mubr.f32.mxu0 0.0
  %1587 = vmatmul.mubr.f32.gmra.mxu0 %v899
  %v1588 = vpop.f32.mrf.mxu0
  %v1589 = vadd.f32 %v536, %v1588
  %v1590 = vpop.f32.mrf.mxu0
  %1591 = vmatprep.mubr.f32.mxu0 0.0
  %1592 = vmatmul.mubr.f32.gmra.mxu0 %v902
  %v1593 = vpop.f32.mrf.mxu0
  %v1594 = vadd.f32 %v536, %v1593
  %v1595 = vpop.f32.mrf.mxu0
  %1596 = vmatprep.mubr.f32.mxu0 0.0
  %1597 = vmatmul.mubr.f32.gmra.mxu0 %v905
  %v1598 = vpop.f32.mrf.mxu0
  %v1599 = vadd.f32 %v536, %v1598
  %v1600 = vpop.f32.mrf.mxu0
  %1601 = vmatprep.mubr.f32.mxu0 0.0
  %1602 = vmatmul.mubr.f32.gmra.mxu0 %v908
  %v1603 = vpop.f32.mrf.mxu0
  %v1604 = vadd.f32 %v536, %v1603
  %v1605 = vpop.f32.mrf.mxu0
  %1606 = vmatprep.mubr.f32.mxu0 0.0
  %1607 = vmatmul.mubr.f32.gmra.mxu0 %v911
  %v1608 = vpop.f32.mrf.mxu0
  %v1609 = vadd.f32 %v536, %v1608
  %v1610 = vpop.f32.mrf.mxu0
  %1611 = vmatprep.mubr.f32.mxu0 0.0
  %1612 = vmatmul.mubr.f32.gmra.mxu0 %v914
  %v1613 = vpop.f32.mrf.mxu0
  %v1614 = vadd.f32 %v536, %v1613
  %v1615 = vpop.f32.mrf.mxu0
  %1616 = vmatprep.mubr.f32.mxu0 0.0
  %1617 = vmatmul.mubr.f32.gmra.mxu0 %v917
  %v1618 = vpop.f32.mrf.mxu0
  %v1619 = vadd.f32 %v536, %v1618
  %v1620 = vpop.f32.mrf.mxu0
  %1621 = vmatprep.mubr.f32.mxu0 0.0
  %1622 = vmatmul.mubr.f32.gmra.mxu0 %v920
  %v1623 = vpop.f32.mrf.mxu0
  %v1624 = vadd.f32 %v536, %v1623
  %v1625 = vpop.f32.mrf.mxu0
  %1626 = vdwg.mxu0
  %v1627 = vadd.f32 %v989, %v467
  %v1628 = vadd.f32 %v994, %v468
  %v1629 = vadd.f32 %v999, %v467
  %v1630 = vadd.f32 %v1004, %v468
  %v1631 = vadd.f32 %v1009, %v469
  %v1632 = vadd.f32 %v1014, %v470
  %v1633 = vadd.f32 %v1019, %v469
  %v1634 = vadd.f32 %v1024, %v470
  %v1635 = vadd.f32 %v1029, %v471
  %v1636 = vadd.f32 %v1034, %v472
  %v1637 = vadd.f32 %v1039, %v471
  %v1638 = vadd.f32 %v1044, %v472
  %v1639 = vadd.f32 %v1049, %v473
  %v1640 = vadd.f32 %v1054, %v474
  %v1641 = vadd.f32 %v1059, %v473
  %v1642 = vadd.f32 %v1064, %v474
  %v1643 = vadd.f32 %v1069, %v475
  %v1644 = vadd.f32 %v1074, %v476
  %v1645 = vadd.f32 %v1079, %v475
  %v1646 = vadd.f32 %v1084, %v476
  %v1647 = vadd.f32 %v1089, %v477
  %v1648 = vadd.f32 %v1094, %v478
  %v1649 = vadd.f32 %v1099, %v477
  %v1650 = vadd.f32 %v1104, %v478
  %v1651 = vadd.f32 %v1109, %v479
  %v1652 = vadd.f32 %v1114, %v480
  %v1653 = vadd.f32 %v1119, %v479
  %v1654 = vadd.f32 %v1124, %v480
  %v1655 = vadd.f32 %v1129, %v481
  %v1656 = vadd.f32 %v1134, %v482
  %v1657 = vadd.f32 %v1139, %v481
  %v1658 = vadd.f32 %v1144, %v482
  %v1659 = vadd.f32 %v1149, %v483
  %v1660 = vadd.f32 %v1154, %v484
  %v1661 = vadd.f32 %v1159, %v483
  %v1662 = vadd.f32 %v1164, %v484
  %v1663 = vadd.f32 %v1169, %v485
  %v1664 = vadd.f32 %v1174, %v486
  %v1665 = vadd.f32 %v1179, %v485
  %v1666 = vadd.f32 %v1184, %v486
  %v1667 = vadd.f32 %v1189, %v487
  %v1668 = vadd.f32 %v1194, %v488
  %v1669 = vadd.f32 %v1199, %v487
  %v1670 = vadd.f32 %v1204, %v488
  %v1671 = vadd.f32 %v1209, %v489
  %v1672 = vadd.f32 %v1214, %v490
  %v1673 = vadd.f32 %v1219, %v489
  %v1674 = vadd.f32 %v1224, %v490
  %v1675 = vadd.f32 %v1229, %v491
  %v1676 = vadd.f32 %v1234, %v492
  %v1677 = vadd.f32 %v1239, %v491
  %v1678 = vadd.f32 %v1244, %v492
  %v1679 = vadd.f32 %v1249, %v493
  %v1680 = vadd.f32 %v1254, %v494
  %v1681 = vadd.f32 %v1259, %v493
  %v1682 = vadd.f32 %v1264, %v494
  %v1683 = vadd.f32 %v1269, %v495
  %v1684 = vadd.f32 %v1274, %v496
  %v1685 = vadd.f32 %v1279, %v495
  %v1686 = vadd.f32 %v1284, %v496
  %v1687 = vadd.f32 %v1289, %v497
  %v1688 = vadd.f32 %v1294, %v498
  %v1689 = vadd.f32 %v1299, %v497
  %v1690 = vadd.f32 %v1304, %v498
  %v1691 = vadd.f32 %v1309, %v499
  %v1692 = vadd.f32 %v1314, %v500
  %v1693 = vadd.f32 %v1319, %v499
  %v1694 = vadd.f32 %v1324, %v500
  %v1695 = vadd.f32 %v1329, %v501
  %v1696 = vadd.f32 %v1334, %v502
  %v1697 = vadd.f32 %v1339, %v501
  %v1698 = vadd.f32 %v1344, %v502
  %v1699 = vadd.f32 %v1349, %v503
  %v1700 = vadd.f32 %v1354, %v504
  %v1701 = vadd.f32 %v1359, %v503
  %v1702 = vadd.f32 %v1364, %v504
  %v1703 = vadd.f32 %v1369, %v505
  %v1704 = vadd.f32 %v1374, %v506
  %v1705 = vadd.f32 %v1379, %v505
  %v1706 = vadd.f32 %v1384, %v506
  %v1707 = vadd.f32 %v1389, %v507
  %v1708 = vadd.f32 %v1394, %v508
  %v1709 = vadd.f32 %v1399, %v507
  %v1710 = vadd.f32 %v1404, %v508
  %v1711 = vadd.f32 %v1409, %v509
  %v1712 = vadd.f32 %v1414, %v510
  %v1713 = vadd.f32 %v1419, %v509
  %v1714 = vadd.f32 %v1424, %v510
  %v1715 = vadd.f32 %v1429, %v511
  %v1716 = vadd.f32 %v1434, %v512
  %v1717 = vadd.f32 %v1439, %v511
  %v1718 = vadd.f32 %v1444, %v512
  %v1719 = vadd.f32 %v1449, %v513
  %v1720 = vadd.f32 %v1454, %v514
  %v1721 = vadd.f32 %v1459, %v513
  %v1722 = vadd.f32 %v1464, %v514
  %v1723 = vadd.f32 %v1469, %v515
  %v1724 = vadd.f32 %v1474, %v516
  %v1725 = vadd.f32 %v1479, %v515
  %v1726 = vadd.f32 %v1484, %v516
  %v1727 = vadd.f32 %v1489, %v517
  %v1728 = vadd.f32 %v1494, %v518
  %v1729 = vadd.f32 %v1499, %v517
  %v1730 = vadd.f32 %v1504, %v518
  %v1731 = vadd.f32 %v1509, %v519
  %v1732 = vadd.f32 %v1514, %v520
  %v1733 = vadd.f32 %v1519, %v519
  %v1734 = vadd.f32 %v1524, %v520
  %v1735 = vadd.f32 %v1529, %v521
  %v1736 = vadd.f32 %v1534, %v522
  %v1737 = vadd.f32 %v1539, %v521
  %v1738 = vadd.f32 %v1544, %v522
  %v1739 = vadd.f32 %v1549, %v523
  %v1740 = vadd.f32 %v1554, %v524
  %v1741 = vadd.f32 %v1559, %v523
  %v1742 = vadd.f32 %v1564, %v524
  %v1743 = vadd.f32 %v1569, %v525
  %v1744 = vadd.f32 %v1574, %v526
  %v1745 = vadd.f32 %v1579, %v525
  %v1746 = vadd.f32 %v1584, %v526
  %v1747 = vadd.f32 %v1589, %v527
  %v1748 = vadd.f32 %v1594, %v528
  %v1749 = vadd.f32 %v1599, %v527
  %v1750 = vadd.f32 %v1604, %v528
  %v1751 = vadd.f32 %v1609, %v529
  %v1752 = vadd.f32 %v1614, %v530
  %v1753 = vadd.f32 %v1619, %v529
  %v1754 = vadd.f32 %v1624, %v530
  %vm1755 = vcmask 130048
  %1756 = vst.msk [vmem:[%s4] sm:$0xff] %vm1755, %v1627
  %1757 = vst.msk [vmem:[%s4 + $0x8] sm:$0xff] %vm1755, %v1628
  %1758 = vst.msk [vmem:[%s4 + $0x10] sm:$0xff] %vm1755, %v1629
  %1759 = vst.msk [vmem:[%s4 + $0x18] sm:$0xff] %vm1755, %v1630
  %1760 = vst.msk [vmem:[%s4 + $0x20] sm:$0xff] %vm1755, %v1631
  %1761 = vst.msk [vmem:[%s4 + $0x28] sm:$0xff] %vm1755, %v1632
  %1762 = vst.msk [vmem:[%s4 + $0x30] sm:$0xff] %vm1755, %v1633
  %1763 = vst.msk [vmem:[%s4 + $0x38] sm:$0xff] %vm1755, %v1634
  %1764 = vst.msk [vmem:[%s4 + $0x40] sm:$0xff] %vm1755, %v1635
  %1765 = vst.msk [vmem:[%s4 + $0x48] sm:$0xff] %vm1755, %v1636
  %1766 = vst.msk [vmem:[%s4 + $0x50] sm:$0xff] %vm1755, %v1637
  %1767 = vst.msk [vmem:[%s4 + $0x58] sm:$0xff] %vm1755, %v1638
  %1768 = vst.msk [vmem:[%s4 + $0x60] sm:$0xff] %vm1755, %v1639
  %1769 = vst.msk [vmem:[%s4 + $0x68] sm:$0xff] %vm1755, %v1640
  %1770 = vst.msk [vmem:[%s4 + $0x70] sm:$0xff] %vm1755, %v1641
  %1771 = vst.msk [vmem:[%s4 + $0x78] sm:$0xff] %vm1755, %v1642
  %1772 = vst.msk [vmem:[%s4 + $0x80] sm:$0xff] %vm1755, %v1643
  %1773 = vst.msk [vmem:[%s4 + $0x88] sm:$0xff] %vm1755, %v1644
  %1774 = vst.msk [vmem:[%s4 + $0x90] sm:$0xff] %vm1755, %v1645
  %1775 = vst.msk [vmem:[%s4 + $0x98] sm:$0xff] %vm1755, %v1646
  %1776 = vst.msk [vmem:[%s4 + $0xa0] sm:$0xff] %vm1755, %v1647
  %1777 = vst.msk [vmem:[%s4 + $0xa8] sm:$0xff] %vm1755, %v1648
  %1778 = vst.msk [vmem:[%s4 + $0xb0] sm:$0xff] %vm1755, %v1649
  %1779 = vst.msk [vmem:[%s4 + $0xb8] sm:$0xff] %vm1755, %v1650
  %1780 = vst.msk [vmem:[%s4 + $0xc0] sm:$0xff] %vm1755, %v1651
  %1781 = vst.msk [vmem:[%s4 + $0xc8] sm:$0xff] %vm1755, %v1652
  %1782 = vst.msk [vmem:[%s4 + $0xd0] sm:$0xff] %vm1755, %v1653
  %1783 = vst.msk [vmem:[%s4 + $0xd8] sm:$0xff] %vm1755, %v1654
  %1784 = vst.msk [vmem:[%s4 + $0xe0] sm:$0xff] %vm1755, %v1655
  %1785 = vst.msk [vmem:[%s4 + $0xe8] sm:$0xff] %vm1755, %v1656
  %1786 = vst.msk [vmem:[%s4 + $0xf0] sm:$0xff] %vm1755, %v1657
  %1787 = vst.msk [vmem:[%s4 + $0xf8] sm:$0xff] %vm1755, %v1658
  %1788 = vst.msk [vmem:[%s4 + $0x100] sm:$0xff] %vm1755, %v1659
  %1789 = vst.msk [vmem:[%s4 + $0x108] sm:$0xff] %vm1755, %v1660
  %1790 = vst.msk [vmem:[%s4 + $0x110] sm:$0xff] %vm1755, %v1661
  %1791 = vst.msk [vmem:[%s4 + $0x118] sm:$0xff] %vm1755, %v1662
  %1792 = vst.msk [vmem:[%s4 + $0x120] sm:$0xff] %vm1755, %v1663
  %1793 = vst.msk [vmem:[%s4 + $0x128] sm:$0xff] %vm1755, %v1664
  %1794 = vst.msk [vmem:[%s4 + $0x130] sm:$0xff] %vm1755, %v1665
  %1795 = vst.msk [vmem:[%s4 + $0x138] sm:$0xff] %vm1755, %v1666
  %1796 = vst.msk [vmem:[%s4 + $0x140] sm:$0xff] %vm1755, %v1667
  %1797 = vst.msk [vmem:[%s4 + $0x148] sm:$0xff] %vm1755, %v1668
  %1798 = vst.msk [vmem:[%s4 + $0x150] sm:$0xff] %vm1755, %v1669
  %1799 = vst.msk [vmem:[%s4 + $0x158] sm:$0xff] %vm1755, %v1670
  %1800 = vst.msk [vmem:[%s4 + $0x160] sm:$0xff] %vm1755, %v1671
  %1801 = vst.msk [vmem:[%s4 + $0x168] sm:$0xff] %vm1755, %v1672
  %1802 = vst.msk [vmem:[%s4 + $0x170] sm:$0xff] %vm1755, %v1673
  %1803 = vst.msk [vmem:[%s4 + $0x178] sm:$0xff] %vm1755, %v1674
  %1804 = vst.msk [vmem:[%s4 + $0x180] sm:$0xff] %vm1755, %v1675
  %1805 = vst.msk [vmem:[%s4 + $0x188] sm:$0xff] %vm1755, %v1676
  %1806 = vst.msk [vmem:[%s4 + $0x190] sm:$0xff] %vm1755, %v1677
  %1807 = vst.msk [vmem:[%s4 + $0x198] sm:$0xff] %vm1755, %v1678
  %1808 = vst.msk [vmem:[%s4 + $0x1a0] sm:$0xff] %vm1755, %v1679
  %1809 = vst.msk [vmem:[%s4 + $0x1a8] sm:$0xff] %vm1755, %v1680
  %1810 = vst.msk [vmem:[%s4 + $0x1b0] sm:$0xff] %vm1755, %v1681
  %1811 = vst.msk [vmem:[%s4 + $0x1b8] sm:$0xff] %vm1755, %v1682
  %1812 = vst.msk [vmem:[%s4 + $0x1c0] sm:$0xff] %vm1755, %v1683
  %1813 = vst.msk [vmem:[%s4 + $0x1c8] sm:$0xff] %vm1755, %v1684
  %1814 = vst.msk [vmem:[%s4 + $0x1d0] sm:$0xff] %vm1755, %v1685
  %1815 = vst.msk [vmem:[%s4 + $0x1d8] sm:$0xff] %vm1755, %v1686
  %1816 = vst.msk [vmem:[%s4 + $0x1e0] sm:$0xff] %vm1755, %v1687
  %1817 = vst.msk [vmem:[%s4 + $0x1e8] sm:$0xff] %vm1755, %v1688
  %1818 = vst.msk [vmem:[%s4 + $0x1f0] sm:$0xff] %vm1755, %v1689
  %1819 = vst.msk [vmem:[%s4 + $0x1f8] sm:$0xff] %vm1755, %v1690
  %1820 = vst.msk [vmem:[%s4 + $0x200] sm:$0xff] %vm1755, %v1691
  %1821 = vst.msk [vmem:[%s4 + $0x208] sm:$0xff] %vm1755, %v1692
  %1822 = vst.msk [vmem:[%s4 + $0x210] sm:$0xff] %vm1755, %v1693
  %1823 = vst.msk [vmem:[%s4 + $0x218] sm:$0xff] %vm1755, %v1694
  %1824 = vst.msk [vmem:[%s4 + $0x220] sm:$0xff] %vm1755, %v1695
  %1825 = vst.msk [vmem:[%s4 + $0x228] sm:$0xff] %vm1755, %v1696
  %1826 = vst.msk [vmem:[%s4 + $0x230] sm:$0xff] %vm1755, %v1697
  %1827 = vst.msk [vmem:[%s4 + $0x238] sm:$0xff] %vm1755, %v1698
  %1828 = vst.msk [vmem:[%s4 + $0x240] sm:$0xff] %vm1755, %v1699
  %1829 = vst.msk [vmem:[%s4 + $0x248] sm:$0xff] %vm1755, %v1700
  %1830 = vst.msk [vmem:[%s4 + $0x250] sm:$0xff] %vm1755, %v1701
  %1831 = vst.msk [vmem:[%s4 + $0x258] sm:$0xff] %vm1755, %v1702
  %1832 = vst.msk [vmem:[%s4 + $0x260] sm:$0xff] %vm1755, %v1703
  %1833 = vst.msk [vmem:[%s4 + $0x268] sm:$0xff] %vm1755, %v1704
  %1834 = vst.msk [vmem:[%s4 + $0x270] sm:$0xff] %vm1755, %v1705
  %1835 = vst.msk [vmem:[%s4 + $0x278] sm:$0xff] %vm1755, %v1706
  %1836 = vst.msk [vmem:[%s4 + $0x280] sm:$0xff] %vm1755, %v1707
  %1837 = vst.msk [vmem:[%s4 + $0x288] sm:$0xff] %vm1755, %v1708
  %1838 = vst.msk [vmem:[%s4 + $0x290] sm:$0xff] %vm1755, %v1709
  %1839 = vst.msk [vmem:[%s4 + $0x298] sm:$0xff] %vm1755, %v1710
  %1840 = vst.msk [vmem:[%s4 + $0x2a0] sm:$0xff] %vm1755, %v1711
  %1841 = vst.msk [vmem:[%s4 + $0x2a8] sm:$0xff] %vm1755, %v1712
  %1842 = vst.msk [vmem:[%s4 + $0x2b0] sm:$0xff] %vm1755, %v1713
  %1843 = vst.msk [vmem:[%s4 + $0x2b8] sm:$0xff] %vm1755, %v1714
  %1844 = vst.msk [vmem:[%s4 + $0x2c0] sm:$0xff] %vm1755, %v1715
  %1845 = vst.msk [vmem:[%s4 + $0x2c8] sm:$0xff] %vm1755, %v1716
  %1846 = vst.msk [vmem:[%s4 + $0x2d0] sm:$0xff] %vm1755, %v1717
  %1847 = vst.msk [vmem:[%s4 + $0x2d8] sm:$0xff] %vm1755, %v1718
  %1848 = vst.msk [vmem:[%s4 + $0x2e0] sm:$0xff] %vm1755, %v1719
  %1849 = vst.msk [vmem:[%s4 + $0x2e8] sm:$0xff] %vm1755, %v1720
  %1850 = vst.msk [vmem:[%s4 + $0x2f0] sm:$0xff] %vm1755, %v1721
  %1851 = vst.msk [vmem:[%s4 + $0x2f8] sm:$0xff] %vm1755, %v1722
  %1852 = vst.msk [vmem:[%s4 + $0x300] sm:$0xff] %vm1755, %v1723
  %1853 = vst.msk [vmem:[%s4 + $0x308] sm:$0xff] %vm1755, %v1724
  %1854 = vst.msk [vmem:[%s4 + $0x310] sm:$0xff] %vm1755, %v1725
  %1855 = vst.msk [vmem:[%s4 + $0x318] sm:$0xff] %vm1755, %v1726
  %1856 = vst.msk [vmem:[%s4 + $0x320] sm:$0xff] %vm1755, %v1727
  %1857 = vst.msk [vmem:[%s4 + $0x328] sm:$0xff] %vm1755, %v1728
  %1858 = vst.msk [vmem:[%s4 + $0x330] sm:$0xff] %vm1755, %v1729
  %1859 = vst.msk [vmem:[%s4 + $0x338] sm:$0xff] %vm1755, %v1730
  %1860 = vst.msk [vmem:[%s4 + $0x340] sm:$0xff] %vm1755, %v1731
  %1861 = vst.msk [vmem:[%s4 + $0x348] sm:$0xff] %vm1755, %v1732
  %1862 = vst.msk [vmem:[%s4 + $0x350] sm:$0xff] %vm1755, %v1733
  %1863 = vst.msk [vmem:[%s4 + $0x358] sm:$0xff] %vm1755, %v1734
  %1864 = vst.msk [vmem:[%s4 + $0x360] sm:$0xff] %vm1755, %v1735
  %1865 = vst.msk [vmem:[%s4 + $0x368] sm:$0xff] %vm1755, %v1736
  %1866 = vst.msk [vmem:[%s4 + $0x370] sm:$0xff] %vm1755, %v1737
  %1867 = vst.msk [vmem:[%s4 + $0x378] sm:$0xff] %vm1755, %v1738
  %1868 = vst.msk [vmem:[%s4 + $0x380] sm:$0xff] %vm1755, %v1739
  %1869 = vst.msk [vmem:[%s4 + $0x388] sm:$0xff] %vm1755, %v1740
  %1870 = vst.msk [vmem:[%s4 + $0x390] sm:$0xff] %vm1755, %v1741
  %1871 = vst.msk [vmem:[%s4 + $0x398] sm:$0xff] %vm1755, %v1742
  %1872 = vst.msk [vmem:[%s4 + $0x3a0] sm:$0xff] %vm1755, %v1743
  %1873 = vst.msk [vmem:[%s4 + $0x3a8] sm:$0xff] %vm1755, %v1744
  %1874 = vst.msk [vmem:[%s4 + $0x3b0] sm:$0xff] %vm1755, %v1745
  %1875 = vst.msk [vmem:[%s4 + $0x3b8] sm:$0xff] %vm1755, %v1746
  %1876 = vst.msk [vmem:[%s4 + $0x3c0] sm:$0xff] %vm1755, %v1747
  %1877 = vst.msk [vmem:[%s4 + $0x3c8] sm:$0xff] %vm1755, %v1748
  %1878 = vst.msk [vmem:[%s4 + $0x3d0] sm:$0xff] %vm1755, %v1749
  %1879 = vst.msk [vmem:[%s4 + $0x3d8] sm:$0xff] %vm1755, %v1750
  %1880 = vst.msk [vmem:[%s4 + $0x3e0] sm:$0xff] %vm1755, %v1751
  %1881 = vst.msk [vmem:[%s4 + $0x3e8] sm:$0xff] %vm1755, %v1752
  %1882 = vst.msk [vmem:[%s4 + $0x3f0] sm:$0xff] %vm1755, %v1753
  %1883 = vst.msk [vmem:[%s4 + $0x3f8] sm:$0xff] %vm1755, %v1754
  // Predicated region
  $region18: #{topdown_lateral_forward.1} parent=0 // pred_check
    _
  $region19: #{topdown_lateral_forward.1} parent=0 // pred_check_branch
    %1885 = sbr.rel (0) target = $region21
  $region20: #{topdown_lateral_forward.1} parent=0 // pred_region
    _
  $region21: #{topdown_lateral_forward.1} parent=0 // pred_fallthru
    _
  // Predicated region
  $region22: #{topdown_lateral_forward.1} parent=0 // pred_check
    _
  $region23: #{topdown_lateral_forward.1} parent=0 // pred_check_branch
    %1887 = sbr.rel (0) target = $region25
  $region24: #{topdown_lateral_forward.1} parent=0 // pred_region
    _
  $region25: #{topdown_lateral_forward.1} parent=0 // pred_fallthru
    _

</llo_original>
